<compile_context>
chip_gen: v5e
topology: v5e:2x2
jax: 0.10.0
libtpu: 0.0.40
codegen_flags: <defaults>
</compile_context>

<pallas_src>
import functools

import jax
import jax.numpy as jnp
from jax.experimental import pallas as pl
from jax.experimental.pallas import tpu as pltpu


def _attention_kernel(x_ref, wq_ref, wk_ref, wv_ref, wp_ref, b_ref, o_ref,
                      *, num_heads, head_dim, scale):
    # x_ref : (1, N, C)  bf16   current batch element
    # wq_ref/wk_ref/wv_ref : (H, C, D) bf16   per-head "in x out" projection
    # wp_ref: (H, D, C)  bf16   per-head "in x out" output projection
    # b_ref : (1, C)     f32    proj bias
    # o_ref : (1, N, C)  f32
    H, D = num_heads, head_dim
    C = H * D

    x = x_ref[0]                               # (N, C) bf16
    N = x.shape[0]
    xh = jnp.broadcast_to(x, (H, N, C))        # leading-(major)-dim broadcast, cheap

    # Per-head Q/K/V projections on the MXU: bf16 operands, f32 accumulation.
    # Weights arrive pre-transposed, so no in-kernel transpose / slicing.
    q = jnp.einsum("hnc,hcd->hnd", xh, wq_ref[...],
                   preferred_element_type=jnp.float32)
    k = jnp.einsum("hnc,hcd->hnd", xh, wk_ref[...],
                   preferred_element_type=jnp.float32)
    v = jnp.einsum("hnc,hcd->hnd", xh, wv_ref[...],
                   preferred_element_type=jnp.float32)

    # Fold the 1/sqrt(D) scale into q (N*D multiplies instead of N*N).
    q = (q * scale).astype(jnp.bfloat16)
    k = k.astype(jnp.bfloat16)
    v = v.astype(jnp.bfloat16)

    # Head-batched attention scores; softmax in f32.
    s = jnp.einsum("hnd,hmd->hnm", q, k,
                   preferred_element_type=jnp.float32)        # (H, N, N)
    s = s - jnp.max(s, axis=-1, keepdims=True)
    p = jnp.exp(s)
    denom = jnp.sum(p, axis=-1, keepdims=True)
    p = p * pl.reciprocal(denom, approx=True)                 # EUP, not VALU divide

    ctx = jnp.einsum("hnm,hmd->hnd", p.astype(jnp.bfloat16), v,
                     preferred_element_type=jnp.float32)      # (H, N, D)

    # Output projection accumulated per head (replaces transpose+concat+matmul):
    #   y[n, c] = sum_h sum_d ctx[h, n, d] * Wproj[c, h*D + d]
    y = jnp.einsum("hnd,hdc->hnc", ctx.astype(jnp.bfloat16), wp_ref[...],
                   preferred_element_type=jnp.float32)        # (H, N, C)
    y = jnp.sum(y, axis=0) + b_ref[...]                       # (N, C) + (1, C)

    o_ref[0] = y.astype(o_ref.dtype)


def attention_forward(x, w_qkv, w_proj, b_proj, *, num_heads):
    """x: (B, N, C) f32; w_qkv: (3C, C); w_proj: (C, C); b_proj: (C,)."""
    B, N, C = x.shape
    H = num_heads
    D = C // H
    scale = D ** (-0.5)

    # ---- one-time weight preparation in the wrapper (no in-kernel transposes) ----
    # PyTorch nn.Linear stores (out, in).  Split the fused QKV weight and build
    # per-head "in x out" slabs:
    #   wq_r[h, c_in, d]   = W_qkv[h*D + d, c_in]           (rows 0..C-1)
    #   wk_r / wv_r        analogously (rows C..2C-1, 2C..3C-1)
    #   wp_r[h, d, c_out]  = W_proj[c_out, h*D + d]
    wq = w_qkv[0 * C:1 * C].reshape(H, D, C).transpose(0, 2, 1)   # (H, C, D)
    wk = w_qkv[1 * C:2 * C].reshape(H, D, C).transpose(0, 2, 1)   # (H, C, D)
    wv = w_qkv[2 * C:3 * C].reshape(H, D, C).transpose(0, 2, 1)   # (H, C, D)
    wp = jnp.transpose(w_proj).reshape(H, D, C)                   # (H, D, C)

    # bf16 MXU operands (f32 accumulation happens inside the kernel).
    x_b = x.astype(jnp.bfloat16)
    wq = wq.astype(jnp.bfloat16)
    wk = wk.astype(jnp.bfloat16)
    wv = wv.astype(jnp.bfloat16)
    wp = wp.astype(jnp.bfloat16)
    b2d = b_proj.reshape(1, C).astype(jnp.float32)

    kernel = functools.partial(
        _attention_kernel, num_heads=H, head_dim=D, scale=scale)

    weight_map3 = lambda b: (0, 0, 0)   # constant -> weights stay VMEM-resident

    return pl.pallas_call(
        kernel,
        out_shape=jax.ShapeDtypeStruct((B, N, C), jnp.float32),
        grid_spec=pltpu.PrefetchScalarGridSpec(
            num_scalar_prefetch=0,
            grid=(B,),
            in_specs=[
                pl.BlockSpec((1, N, C), lambda b: (b, 0, 0)),   # x
                pl.BlockSpec((H, C, D), weight_map3),           # Wq
                pl.BlockSpec((H, C, D), weight_map3),           # Wk
                pl.BlockSpec((H, C, D), weight_map3),           # Wv
                pl.BlockSpec((H, D, C), weight_map3),           # Wproj
                pl.BlockSpec((1, C), lambda b: (0, 0)),         # bias
            ],
            out_specs=pl.BlockSpec((1, N, C), lambda b: (b, 0, 0)),
        ),
        compiler_params=pltpu.CompilerParams(
            # Batch axis parallel → both v7x TensorCores are used; free on v5e/v6e.
            dimension_semantics=("parallel",),
        ),
    )(x_b, wq, wk, wv, wp, b2d)


def attention_reference(x, w_qkv, w_proj, b_proj, *, num_heads):
    """Plain-JAX (f32) mirror of the PyTorch forward, for verification."""
    B, N, C = x.shape
    head_dim = C // num_heads
    scale = head_dim ** (-0.5)
    qkv = jnp.einsum("bnc,oc->bno", x, w_qkv)            # (B, N, 3C)
    qkv = qkv.reshape(B, N, 3, num_heads, head_dim)
    qkv = jnp.transpose(qkv, (2, 0, 3, 1, 4))            # (3, B, H, N, D)
    q, k, v = qkv[0], qkv[1], qkv[2]
    attn = jnp.einsum("bhnd,bhmd->bhnm", q, k) * scale
    attn = jax.nn.softmax(attn, axis=-1)
    out = jnp.einsum("bhnm,bhmd->bhnd", attn, v)
    out = jnp.transpose(out, (0, 2, 1, 3)).reshape(B, N, C)
    out = jnp.einsum("bnc,oc->bno", out, w_proj) + b_proj
    return out


if __name__ == "__main__":
    # Small shapes consistent with the module: B=2, N=16 tokens, C=64, 8 heads.
    B, N, C = 2, 16, 64
    num_heads = 8

    key = jax.random.PRNGKey(0)
    k_x, k_qkv, k_proj, k_bias = jax.random.split(key, 4)

    x = jax.random.normal(k_x, (B, N, C), dtype=jnp.float32)
    # PyTorch Linear layout (out, in); qkv_bias=False (module default), proj has bias.
    w_qkv = jax.random.normal(k_qkv, (3 * C, C), dtype=jnp.float32) * 0.05
    w_proj = jax.random.normal(k_proj, (C, C), dtype=jnp.float32) * 0.05
    b_proj = jax.random.normal(k_bias, (C,), dtype=jnp.float32) * 0.05

    out = attention_forward(x, w_qkv, w_proj, b_proj, num_heads=num_heads)
    out = jax.block_until_ready(out)

    ref = attention_reference(x, w_qkv, w_proj, b_proj, num_heads=num_heads)
    assert out.shape == (B, N, C)
    max_err = jnp.max(jnp.abs(out - ref))
    # Tolerances loosened for bf16 MXU operands (softmax / accumulation stay f32).
    assert jnp.allclose(out, ref, rtol=2e-2, atol=2e-2), (
        f"mismatch vs reference, max |err| = {max_err}")

    print("KERNEL_OK")
</pallas_src>

<mosaic_0001>
module attributes {stable_mosaic.version = 11 : i64} {
  func.func @_attention_kernel(%arg0: i32, %arg1: memref<1x16x64xbf16, #tpu.memory_space<vmem>>, %arg2: memref<8x64x8xbf16, #tpu.memory_space<vmem>>, %arg3: memref<8x64x8xbf16, #tpu.memory_space<vmem>>, %arg4: memref<8x64x8xbf16, #tpu.memory_space<vmem>>, %arg5: memref<8x8x64xbf16, #tpu.memory_space<vmem>>, %arg6: memref<1x64xf32, #tpu.memory_space<vmem>>, %arg7: memref<1x16x64xf32, #tpu.memory_space<vmem>>) attributes {dimension_semantics = [#tpu.dimension_semantics<parallel>], iteration_bounds = array<i64: 2>, scalar_prefetch = 0 : i64, scratch_operands = 0 : i64, tpu.core_type = #tpu.core_type<tc>, window_params = [{transform_indices = @transform_0, window_bounds = array<i64: 1, 16, 64>}, {pipeline_mode = #tpu.pipeline_mode<synchronous>, transform_indices = @transform_1, window_bounds = array<i64: 8, 64, 8>}, {pipeline_mode = #tpu.pipeline_mode<synchronous>, transform_indices = @transform_2, window_bounds = array<i64: 8, 64, 8>}, {pipeline_mode = #tpu.pipeline_mode<synchronous>, transform_indices = @transform_3, window_bounds = array<i64: 8, 64, 8>}, {pipeline_mode = #tpu.pipeline_mode<synchronous>, transform_indices = @transform_4, window_bounds = array<i64: 8, 8, 64>}, {pipeline_mode = #tpu.pipeline_mode<synchronous>, transform_indices = @transform_5, window_bounds = array<i64: 1, 64>}, {transform_indices = @transform_6, window_bounds = array<i64: 1, 16, 64>}]} {
    %c0 = arith.constant 0 : index
    %c0_0 = arith.constant 0 : index
    %c0_1 = arith.constant 0 : index
    %0 = vector.load %arg1[%c0, %c0_0, %c0_1] : memref<1x16x64xbf16, #tpu.memory_space<vmem>>, vector<1x16x64xbf16>
    %1 = vector.shape_cast %0 : vector<1x16x64xbf16> to vector<16x64xbf16>
    %2 = vector.shape_cast %1 : vector<16x64xbf16> to vector<1x16x64xbf16>
    %3 = vector.broadcast %2 : vector<1x16x64xbf16> to vector<8x16x64xbf16>
    %c0_2 = arith.constant 0 : index
    %c0_3 = arith.constant 0 : index
    %c0_4 = arith.constant 0 : index
    %4 = vector.load %arg2[%c0_2, %c0_3, %c0_4] : memref<8x64x8xbf16, #tpu.memory_space<vmem>>, vector<8x64x8xbf16>
    "tpu.trace_start"() <{level = 10 : i32, message = "hnc,hcd->hnd"}> : () -> ()
    %cst = arith.constant dense<0.000000e+00> : vector<8x16x8xf32>
    %5 = tpu.matmul %3, %4, %cst {dimension_numbers = #tpu.dot_dimension_numbers<[2], [1], [1], [2], [0, 0, 0, 1, 1, 2], [0], [0]>} : vector<8x16x64xbf16>, vector<8x64x8xbf16>, vector<8x16x8xf32> -> vector<8x16x8xf32>
    "tpu.trace_stop"() : () -> ()
    %c0_5 = arith.constant 0 : index
    %c0_6 = arith.constant 0 : index
    %c0_7 = arith.constant 0 : index
    %6 = vector.load %arg3[%c0_5, %c0_6, %c0_7] : memref<8x64x8xbf16, #tpu.memory_space<vmem>>, vector<8x64x8xbf16>
    "tpu.trace_start"() <{level = 10 : i32, message = "hnc,hcd->hnd"}> : () -> ()
    %cst_8 = arith.constant dense<0.000000e+00> : vector<8x16x8xf32>
    %7 = tpu.matmul %3, %6, %cst_8 {dimension_numbers = #tpu.dot_dimension_numbers<[2], [1], [1], [2], [0, 0, 0, 1, 1, 2], [0], [0]>} : vector<8x16x64xbf16>, vector<8x64x8xbf16>, vector<8x16x8xf32> -> vector<8x16x8xf32>
    "tpu.trace_stop"() : () -> ()
    %c0_9 = arith.constant 0 : index
    %c0_10 = arith.constant 0 : index
    %c0_11 = arith.constant 0 : index
    %8 = vector.load %arg4[%c0_9, %c0_10, %c0_11] : memref<8x64x8xbf16, #tpu.memory_space<vmem>>, vector<8x64x8xbf16>
    "tpu.trace_start"() <{level = 10 : i32, message = "hnc,hcd->hnd"}> : () -> ()
    %cst_12 = arith.constant dense<0.000000e+00> : vector<8x16x8xf32>
    %9 = tpu.matmul %3, %8, %cst_12 {dimension_numbers = #tpu.dot_dimension_numbers<[2], [1], [1], [2], [0, 0, 0, 1, 1, 2], [0], [0]>} : vector<8x16x64xbf16>, vector<8x64x8xbf16>, vector<8x16x8xf32> -> vector<8x16x8xf32>
    "tpu.trace_stop"() : () -> ()
    %cst_13 = arith.constant 0.353553385 : f32
    %10 = vector.broadcast %cst_13 : f32 to vector<8x16x8xf32>
    %11 = arith.mulf %5, %10 : vector<8x16x8xf32>
    %12 = arith.truncf %11 : vector<8x16x8xf32> to vector<8x16x8xbf16>
    %13 = arith.truncf %7 : vector<8x16x8xf32> to vector<8x16x8xbf16>
    %14 = arith.truncf %9 : vector<8x16x8xf32> to vector<8x16x8xbf16>
    "tpu.trace_start"() <{level = 10 : i32, message = "hnd,hmd->hnm"}> : () -> ()
    %cst_14 = arith.constant dense<0.000000e+00> : vector<8x16x16xf32>
    %15 = tpu.matmul %12, %13, %cst_14 {dimension_numbers = #tpu.dot_dimension_numbers<[2], [2], [1], [1], [0, 0, 0, 1, 1, 1], [0], [0]>} : vector<8x16x8xbf16>, vector<8x16x8xbf16>, vector<8x16x16xf32> -> vector<8x16x16xf32>
    "tpu.trace_stop"() : () -> ()
    %cst_15 = arith.constant dense<0xFF800000> : vector<8x16xf32>
    %16 = vector.multi_reduction <maximumf>, %15, %cst_15 [2] : vector<8x16x16xf32> to vector<8x16xf32>
    %17 = vector.shape_cast %16 : vector<8x16xf32> to vector<8x16x1xf32>
    %18 = vector.broadcast %17 : vector<8x16x1xf32> to vector<8x16x16xf32>
    %19 = arith.subf %15, %18 : vector<8x16x16xf32>
    %20 = math.exp %19 : vector<8x16x16xf32>
    %cst_16 = arith.constant dense<0.000000e+00> : vector<8x16xf32>
    %21 = vector.multi_reduction <add>, %20, %cst_16 [2] : vector<8x16x16xf32> to vector<8x16xf32>
    %22 = vector.shape_cast %21 : vector<8x16xf32> to vector<8x16x1xf32>
    %23 = tpu.reciprocal %22 {approx = true} : vector<8x16x1xf32> -> vector<8x16x1xf32>
    %24 = vector.broadcast %23 : vector<8x16x1xf32> to vector<8x16x16xf32>
    %25 = arith.mulf %20, %24 : vector<8x16x16xf32>
    %26 = arith.truncf %25 : vector<8x16x16xf32> to vector<8x16x16xbf16>
    "tpu.trace_start"() <{level = 10 : i32, message = "hnm,hmd->hnd"}> : () -> ()
    %cst_17 = arith.constant dense<0.000000e+00> : vector<8x16x8xf32>
    %27 = tpu.matmul %26, %14, %cst_17 {dimension_numbers = #tpu.dot_dimension_numbers<[2], [1], [1], [2], [0, 0, 0, 1, 1, 2], [0], [0]>} : vector<8x16x16xbf16>, vector<8x16x8xbf16>, vector<8x16x8xf32> -> vector<8x16x8xf32>
    "tpu.trace_stop"() : () -> ()
    %28 = arith.truncf %27 : vector<8x16x8xf32> to vector<8x16x8xbf16>
    %c0_18 = arith.constant 0 : index
    %c0_19 = arith.constant 0 : index
    %c0_20 = arith.constant 0 : index
    %29 = vector.load %arg5[%c0_18, %c0_19, %c0_20] : memref<8x8x64xbf16, #tpu.memory_space<vmem>>, vector<8x8x64xbf16>
    "tpu.trace_start"() <{level = 10 : i32, message = "hnd,hdc->hnc"}> : () -> ()
    %cst_21 = arith.constant dense<0.000000e+00> : vector<8x16x64xf32>
    %30 = tpu.matmul %28, %29, %cst_21 {dimension_numbers = #tpu.dot_dimension_numbers<[2], [1], [1], [2], [0, 0, 0, 1, 1, 2], [0], [0]>} : vector<8x16x8xbf16>, vector<8x8x64xbf16>, vector<8x16x64xf32> -> vector<8x16x64xf32>
    "tpu.trace_stop"() : () -> ()
    %cst_22 = arith.constant dense<0.000000e+00> : vector<16x64xf32>
    %31 = vector.multi_reduction <add>, %30, %cst_22 [0] : vector<8x16x64xf32> to vector<16x64xf32>
    %c0_23 = arith.constant 0 : index
    %c0_24 = arith.constant 0 : index
    %32 = vector.load %arg6[%c0_23, %c0_24] : memref<1x64xf32, #tpu.memory_space<vmem>>, vector<1x64xf32>
    %33 = vector.broadcast %32 : vector<1x64xf32> to vector<16x64xf32>
    %34 = arith.addf %31, %33 : vector<16x64xf32>
    %c0_25 = arith.constant 0 : index
    %c0_26 = arith.constant 0 : index
    %c0_27 = arith.constant 0 : index
    %35 = vector.load %arg7[%c0_25, %c0_26, %c0_27] : memref<1x16x64xf32, #tpu.memory_space<vmem>>, vector<1x16x64xf32>
    %36 = vector.shape_cast %35 : vector<1x16x64xf32> to vector<16x64xf32>
    %37 = vector.shape_cast %34 : vector<16x64xf32> to vector<1x16x64xf32>
    tpu.vector_store %arg7[%c0_25, %c0_26, %c0_27], %37 {strides = array<i32>} : memref<1x16x64xf32, #tpu.memory_space<vmem>>, vector<1x16x64xf32>,
    return
  }
  func.func @transform_0(%arg0: i32) -> (i32, i32, i32) {
    %c0_i32 = arith.constant 0 : i32
    %c0_i32_0 = arith.constant 0 : i32
    %c0_i32_1 = arith.constant 0 : i32
    return %arg0, %c0_i32, %c0_i32_0 : i32, i32, i32
  }
  func.func @transform_1(%arg0: i32) -> (i32, i32, i32) {
    %c0_i32 = arith.constant 0 : i32
    %c0_i32_0 = arith.constant 0 : i32
    %c0_i32_1 = arith.constant 0 : i32
    %c0_i32_2 = arith.constant 0 : i32
    return %c0_i32, %c0_i32_0, %c0_i32_1 : i32, i32, i32
  }
  func.func @transform_2(%arg0: i32) -> (i32, i32, i32) {
    %c0_i32 = arith.constant 0 : i32
    %c0_i32_0 = arith.constant 0 : i32
    %c0_i32_1 = arith.constant 0 : i32
    %c0_i32_2 = arith.constant 0 : i32
    return %c0_i32, %c0_i32_0, %c0_i32_1 : i32, i32, i32
  }
  func.func @transform_3(%arg0: i32) -> (i32, i32, i32) {
    %c0_i32 = arith.constant 0 : i32
    %c0_i32_0 = arith.constant 0 : i32
    %c0_i32_1 = arith.constant 0 : i32
    %c0_i32_2 = arith.constant 0 : i32
    return %c0_i32, %c0_i32_0, %c0_i32_1 : i32, i32, i32
  }
  func.func @transform_4(%arg0: i32) -> (i32, i32, i32) {
    %c0_i32 = arith.constant 0 : i32
    %c0_i32_0 = arith.constant 0 : i32
    %c0_i32_1 = arith.constant 0 : i32
    %c0_i32_2 = arith.constant 0 : i32
    return %c0_i32, %c0_i32_0, %c0_i32_1 : i32, i32, i32
  }
  func.func @transform_5(%arg0: i32) -> (i32, i32) {
    %c0_i32 = arith.constant 0 : i32
    %c0_i32_0 = arith.constant 0 : i32
    %c0_i32_1 = arith.constant 0 : i32
    return %c0_i32, %c0_i32_0 : i32, i32
  }
  func.func @transform_6(%arg0: i32) -> (i32, i32, i32) {
    %c0_i32 = arith.constant 0 : i32
    %c0_i32_0 = arith.constant 0 : i32
    %c0_i32_1 = arith.constant 0 : i32
    return %arg0, %c0_i32, %c0_i32_0 : i32, i32, i32
  }
}

</mosaic_0001>

<llo_original>
// kernel: tpu_custom_call.1
$region0: #{tpu_custom_call.1}
  #allocation0 [shape = 'u32[]', space=smem, size = 0x4, offset = 0x4, fixed_abs, tag = 'smem constant byte address 0x4 - core index']
  #allocation1 [shape = 'u32[72,128]{1,0:T(1,128)}', space=vmem, size = 0x9000, scoped, tag = 'internal scratch']
  %s0 = inlined_call_operand.vmem [shape: bf16[2,16,64], index: 0, kind: input, shape index: {}]
  %s1 = inlined_call_operand.vmem [shape: bf16[8,64,8], index: 1, kind: input, shape index: {}]
  %s2 = inlined_call_operand.vmem [shape: bf16[8,64,8], index: 2, kind: input, shape index: {}]
  %s3 = inlined_call_operand.vmem [shape: bf16[8,64,8], index: 3, kind: input, shape index: {}]
  %s4 = inlined_call_operand.vmem [shape: bf16[8,8,64], index: 4, kind: input, shape index: {}]
  %s5 = inlined_call_operand.vmem [shape: f32[1,64], index: 5, kind: input, shape index: {}]
  %s6 = inlined_call_operand.hbm [shape: f32[2,16,64], index: 6, kind: output, shape index: {}]
  %s7 = sld [smem:[#allocation0]]
  $region57: #{tpu_custom_call.1} parent=0
    _
  %s9 = ssub.s32 1, %s7
  %s10 = scalar_select 0, %s9, %s7
  $region1: #{tpu_custom_call.1} parent=0
    #allocation2 [shape = 'u8[16384]{0}', space=vmem, size = 0x4000, scoped, tag = 'output window, operand 0']
    #allocation3 [shape = 's32[2]{0}', space=sflag, size = 0x8, scoped, tag = 'scoped memory for tpu_custom_call.1']
    %11 = vsyncpa [#allocation3], 0
    %s12 = scalar_lea.sflag [#allocation3], 1
    %13 = vsyncpa %s12, 0
    loop: start=0, step=1, limit=4
    $region2: #{tpu_custom_call.1} parent=1 // loop_pre_header
      _
    $region3: #{tpu_custom_call.1} parent=1 // loop_header
      %s15 = sphi 0, %s19
      %p16 = scmp.ge.s32.totalorder %s15, 4
      %s25 = sphi 0, %s27
      %s28 = sphi 0, %s25
      %s29 = sphi 0, %s28
      %s45 = sphi 0, %s29
      %s49 = sphi 0, %s49
      %s51 = sphi 0, %s49
      %s52 = sphi 0, %s51
      %s66 = sphi 0, %s52
      %s70 = sphi 0, %s70
      %s72 = sphi 0, %s70
      %s73 = sphi 0, %s72
      %s87 = sphi 0, %s73
      %s91 = sphi 0, %s91
      %s93 = sphi 0, %s91
      %s94 = sphi 0, %s93
      %s108 = sphi 0, %s94
      %s112 = sphi 0, %s112
      %s114 = sphi 0, %s112
      %s115 = sphi 0, %s114
      %s129 = sphi 0, %s115
      %s133 = sphi 0, %s133
      %s135 = sphi 0, %s133
      %s136 = sphi 0, %s135
      %s150 = sphi 0, %s136
      %s156 = sphi 0, %s158
      %s159 = sphi 0, %s156
      %s160 = sphi 0, %s159
      %s176 = sphi 0, %s160
    $region4: #{tpu_custom_call.1} parent=1 // loop_header_branch
      %18 = sbr.rel (%p16) target = $region8
    $region5: #{tpu_custom_call.1} parent=1 // loop_body
      %s20 = ssub.s32 %s15, 1
      %s21 = ssub.s32 %s15, 2
      %s22 = sadd.s32 %s15, 1
      %s23 = ssub.s32 %s15, %s22
      %p24 = scmp.eq.s32.totalorder %s23, 0
      %s26 = sadd.s32 %s25, 1
      %s27 = scalar_select %p24, %s25, %s26
      %p30 = pneg %p24
      %p31 = scmp.eq.s32.totalorder %s15, 1
      %p32 = por %p30, %p31
      %p33 = scmp.ne.s32.totalorder %s25, %s28
      %p34 = scmp.eq.s32.totalorder %s15, 0
      %p35 = por %p33, %p34
      %p36 = scmp.ne.s32.totalorder %s25, %s28
      %p37 = scmp.eq.s32.totalorder %s20, 1
      %p38 = por %p36, %p37
      %p39 = scmp.ne.s32.totalorder %s28, %s29
      %p40 = scmp.eq.s32.totalorder %s20, 0
      %p41 = por %p39, %p40
      %p42 = scmp.ne.s32.totalorder %s28, %s29
      %p43 = scmp.eq.s32.totalorder %s21, 1
      %p44 = por %p42, %p43
      %p46 = scmp.ne.s32.totalorder %s29, %s45
      %p47 = scmp.eq.s32.totalorder %s21, 0
      %p48 = por %p46, %p47
      %s50 = sadd.s32 %s49, 1
      %p53 = scmp.eq.s32.totalorder %s15, 1
      %p54 = scmp.ne.s32.totalorder %s49, %s51
      %p55 = scmp.eq.s32.totalorder %s15, 0
      %p56 = por %p54, %p55
      %p57 = scmp.ne.s32.totalorder %s49, %s51
      %p58 = scmp.eq.s32.totalorder %s20, 1
      %p59 = por %p57, %p58
      %p60 = scmp.ne.s32.totalorder %s51, %s52
      %p61 = scmp.eq.s32.totalorder %s20, 0
      %p62 = por %p60, %p61
      %p63 = scmp.ne.s32.totalorder %s51, %s52
      %p64 = scmp.eq.s32.totalorder %s21, 1
      %p65 = por %p63, %p64
      %p67 = scmp.ne.s32.totalorder %s52, %s66
      %p68 = scmp.eq.s32.totalorder %s21, 0
      %p69 = por %p67, %p68
      %s71 = sadd.s32 %s70, 1
      %p74 = scmp.eq.s32.totalorder %s15, 1
      %p75 = scmp.ne.s32.totalorder %s70, %s72
      %p76 = scmp.eq.s32.totalorder %s15, 0
      %p77 = por %p75, %p76
      %p78 = scmp.ne.s32.totalorder %s70, %s72
      %p79 = scmp.eq.s32.totalorder %s20, 1
      %p80 = por %p78, %p79
      %p81 = scmp.ne.s32.totalorder %s72, %s73
      %p82 = scmp.eq.s32.totalorder %s20, 0
      %p83 = por %p81, %p82
      %p84 = scmp.ne.s32.totalorder %s72, %s73
      %p85 = scmp.eq.s32.totalorder %s21, 1
      %p86 = por %p84, %p85
      %p88 = scmp.ne.s32.totalorder %s73, %s87
      %p89 = scmp.eq.s32.totalorder %s21, 0
      %p90 = por %p88, %p89
      %s92 = sadd.s32 %s91, 1
      %p95 = scmp.eq.s32.totalorder %s15, 1
      %p96 = scmp.ne.s32.totalorder %s91, %s93
      %p97 = scmp.eq.s32.totalorder %s15, 0
      %p98 = por %p96, %p97
      %p99 = scmp.ne.s32.totalorder %s91, %s93
      %p100 = scmp.eq.s32.totalorder %s20, 1
      %p101 = por %p99, %p100
      %p102 = scmp.ne.s32.totalorder %s93, %s94
      %p103 = scmp.eq.s32.totalorder %s20, 0
      %p104 = por %p102, %p103
      %p105 = scmp.ne.s32.totalorder %s93, %s94
      %p106 = scmp.eq.s32.totalorder %s21, 1
      %p107 = por %p105, %p106
      %p109 = scmp.ne.s32.totalorder %s94, %s108
      %p110 = scmp.eq.s32.totalorder %s21, 0
      %p111 = por %p109, %p110
      %s113 = sadd.s32 %s112, 1
      %p116 = scmp.eq.s32.totalorder %s15, 1
      %p117 = scmp.ne.s32.totalorder %s112, %s114
      %p118 = scmp.eq.s32.totalorder %s15, 0
      %p119 = por %p117, %p118
      %p120 = scmp.ne.s32.totalorder %s112, %s114
      %p121 = scmp.eq.s32.totalorder %s20, 1
      %p122 = por %p120, %p121
      %p123 = scmp.ne.s32.totalorder %s114, %s115
      %p124 = scmp.eq.s32.totalorder %s20, 0
      %p125 = por %p123, %p124
      %p126 = scmp.ne.s32.totalorder %s114, %s115
      %p127 = scmp.eq.s32.totalorder %s21, 1
      %p128 = por %p126, %p127
      %p130 = scmp.ne.s32.totalorder %s115, %s129
      %p131 = scmp.eq.s32.totalorder %s21, 0
      %p132 = por %p130, %p131
      %s134 = sadd.s32 %s133, 1
      %p137 = scmp.eq.s32.totalorder %s15, 1
      %p138 = scmp.ne.s32.totalorder %s133, %s135
      %p139 = scmp.eq.s32.totalorder %s15, 0
      %p140 = por %p138, %p139
      %p141 = scmp.ne.s32.totalorder %s133, %s135
      %p142 = scmp.eq.s32.totalorder %s20, 1
      %p143 = por %p141, %p142
      %p144 = scmp.ne.s32.totalorder %s135, %s136
      %p145 = scmp.eq.s32.totalorder %s20, 0
      %p146 = por %p144, %p145
      %p147 = scmp.ne.s32.totalorder %s135, %s136
      %p148 = scmp.eq.s32.totalorder %s21, 1
      %p149 = por %p147, %p148
      %p151 = scmp.ne.s32.totalorder %s136, %s150
      %p152 = scmp.eq.s32.totalorder %s21, 0
      %p153 = por %p151, %p152
      %s154 = ssub.s32 %s15, %s22
      %p155 = scmp.eq.s32.totalorder %s154, 0
      %s157 = sadd.s32 %s156, 1
      %s158 = scalar_select %p155, %s156, %s157
      %p161 = pneg %p155
      %p162 = scmp.eq.s32.totalorder %s15, 1
      %p163 = por %p161, %p162
      %p164 = scmp.ne.s32.totalorder %s156, %s159
      %p165 = scmp.eq.s32.totalorder %s15, 0
      %p166 = por %p164, %p165
      %p167 = scmp.ne.s32.totalorder %s156, %s159
      %p168 = scmp.eq.s32.totalorder %s20, 1
      %p169 = por %p167, %p168
      %p170 = scmp.ne.s32.totalorder %s159, %s160
      %p171 = scmp.eq.s32.totalorder %s20, 0
      %p172 = por %p170, %p171
      %p173 = scmp.ne.s32.totalorder %s159, %s160
      %p174 = scmp.eq.s32.totalorder %s21, 1
      %p175 = por %p173, %p174
      %p177 = scmp.ne.s32.totalorder %s160, %s176
      %p178 = scmp.eq.s32.totalorder %s21, 0
      %p179 = por %p177, %p178
      %p180 = scmp.le.s32.totalorder 1, %s15
      %p181 = scmp.lt.s32.totalorder %s15, 3
      %p182 = pnand %p180, %p181
      %p183 = pneg %p182
      // Predicated region
      $region9: #{tpu_custom_call.1} parent=5 // pred_check
        _
      $region10: #{tpu_custom_call.1} parent=5 // pred_check_branch
        %185 = sbr.rel (%p182) target = $region12
      $region11: #{tpu_custom_call.1} parent=5 // pred_region
        %s186 = ssub.s32 %s15, 1
        // Predicated region
        $region13: #{tpu_custom_call.1} parent=11 // pred_check
          %p187 = pneg %p62
        $region14: #{tpu_custom_call.1} parent=11 // pred_check_branch
          %189 = sbr.rel (%p187) target = $region16
        $region15: #{tpu_custom_call.1} parent=11 // pred_region
          _
        $region16: #{tpu_custom_call.1} parent=11 // pred_fallthru
          _
        // Predicated region
        $region17: #{tpu_custom_call.1} parent=11 // pred_check
          %p190 = pneg %p83
        $region18: #{tpu_custom_call.1} parent=11 // pred_check_branch
          %192 = sbr.rel (%p190) target = $region20
        $region19: #{tpu_custom_call.1} parent=11 // pred_region
          _
        $region20: #{tpu_custom_call.1} parent=11 // pred_fallthru
          _
        // Predicated region
        $region21: #{tpu_custom_call.1} parent=11 // pred_check
          %p193 = pneg %p104
        $region22: #{tpu_custom_call.1} parent=11 // pred_check_branch
          %195 = sbr.rel (%p193) target = $region24
        $region23: #{tpu_custom_call.1} parent=11 // pred_region
          _
        $region24: #{tpu_custom_call.1} parent=11 // pred_fallthru
          _
        // Predicated region
        $region25: #{tpu_custom_call.1} parent=11 // pred_check
          %p196 = pneg %p125
        $region26: #{tpu_custom_call.1} parent=11 // pred_check_branch
          %198 = sbr.rel (%p196) target = $region28
        $region27: #{tpu_custom_call.1} parent=11 // pred_region
          _
        $region28: #{tpu_custom_call.1} parent=11 // pred_fallthru
          _
        // Predicated region
        $region29: #{tpu_custom_call.1} parent=11 // pred_check
          %p199 = pneg %p146
        $region30: #{tpu_custom_call.1} parent=11 // pred_check_branch
          %201 = sbr.rel (%p199) target = $region32
        $region31: #{tpu_custom_call.1} parent=11 // pred_region
          _
        $region32: #{tpu_custom_call.1} parent=11 // pred_fallthru
          _
      $region12: #{tpu_custom_call.1} parent=5 // pred_fallthru
        _
      %p202 = scmp.lt.s32.totalorder %s15, 2
      // Predicated region
      $region33: #{tpu_custom_call.1} parent=5 // pred_check
        %p203 = pneg %p202
      $region34: #{tpu_custom_call.1} parent=5 // pred_check_branch
        %205 = sbr.rel (%p203) target = $region36
      $region35: #{tpu_custom_call.1} parent=5 // pred_region
        // Predicated region
        $region37: #{tpu_custom_call.1} parent=35 // pred_check
          %p206 = pneg %p35
        $region38: #{tpu_custom_call.1} parent=35 // pred_check_branch
          %208 = sbr.rel (%p206) target = $region40
        $region39: #{tpu_custom_call.1} parent=35 // pred_region
          %p209 = scmp.lt.s32.totalorder %s15, 1
          %s210 = scalar_select %p209, %s15, 1
          %s211 = smul.addr %s210, 2
          %s212 = smul.addr %s211, 4
          %s213 = scalar_lea.vmem %s0, %s212
        $region40: #{tpu_custom_call.1} parent=35 // pred_fallthru
          _
      $region36: #{tpu_custom_call.1} parent=5 // pred_fallthru
        _
      %p214 = scmp.le.s32.totalorder 1, %s15
      %p215 = scmp.lt.s32.totalorder %s15, 3
      %p216 = pnand %p214, %p215
      %p217 = pneg %p216
      // Predicated region
      $region41: #{tpu_custom_call.1} parent=5 // pred_check
        _
      $region42: #{tpu_custom_call.1} parent=5 // pred_check_branch
        %219 = sbr.rel (%p216) target = $region44
      $region43: #{tpu_custom_call.1} parent=5 // pred_region
        %s220 = ssub.s32 %s15, 1
        %p221 = scmp.lt.s32.totalorder %s20, 1
        %s222 = scalar_select %p221, %s20, 1
        %s223 = smul.addr %s222, 2
        %s224 = smul.addr %s223, 4
        %s225 = scalar_lea.vmem %s0, %s224
        %p226 = pneg %p41
        %p227 = pneg %p38
        %p228 = pneg %p62
        %p229 = pneg %p59
        %p230 = pneg %p83
        %p231 = pneg %p80
        %p232 = pneg %p104
        %p233 = pneg %p101
        %p234 = pneg %p125
        %p235 = pneg %p122
        %p236 = pneg %p146
        %p237 = pneg %p143
        %p238 = pneg %p172
        %p239 = pneg %p169
        %s240 = sand.u32 %s159, 1
        %s241 = scalar_lea.sflag [#allocation3], %s240
        %s242 = sand.u32 %s159, 1
        %s243 = smul.addr %s242, 16
        %s244 = scalar_lea.vmem [#allocation2], %s243
        %p245 = scmp.lt.s32.totalorder %s20, 1
        %s246 = scalar_select %p245, %s20, 1
        %s247 = smul.addr %s246, 2
        %s248 = smul.addr %s247, 4
        %s249 = scalar_lea.vmem %s0, %s248
        %v251 = vld [vmem:[%s249] sm:$0xf]
        %v252 = vld [vmem:[%s249 + $0x4] sm:$0xf]
        %v253 = vld [vmem:[%s1] sm:$0xf]
        %v254 = vld [vmem:[%s1 + $0x4] sm:$0xf]
        %v255 = vld [vmem:[%s1 + $0x8] sm:$0xf]
        %v256 = vld [vmem:[%s1 + $0xc] sm:$0xf]
        %v257 = vld [vmem:[%s1 + $0x10] sm:$0xf]
        %v258 = vld [vmem:[%s1 + $0x14] sm:$0xf]
        %v259 = vld [vmem:[%s1 + $0x18] sm:$0xf]
        %v260 = vld [vmem:[%s1 + $0x1c] sm:$0xf]
        %v261 = vld [vmem:[%s1 + $0x20] sm:$0xf]
        %v262 = vld [vmem:[%s1 + $0x24] sm:$0xf]
        %v263 = vld [vmem:[%s1 + $0x28] sm:$0xf]
        %v264 = vld [vmem:[%s1 + $0x2c] sm:$0xf]
        %v265 = vld [vmem:[%s1 + $0x30] sm:$0xf]
        %v266 = vld [vmem:[%s1 + $0x34] sm:$0xf]
        %v267 = vld [vmem:[%s1 + $0x38] sm:$0xf]
        %v268 = vld [vmem:[%s1 + $0x3c] sm:$0xf]
        %v269 = vld [vmem:[%s1 + $0x40] sm:$0xf]
        %v270 = vld [vmem:[%s1 + $0x44] sm:$0xf]
        %v271 = vld [vmem:[%s1 + $0x48] sm:$0xf]
        %v272 = vld [vmem:[%s1 + $0x4c] sm:$0xf]
        %v273 = vld [vmem:[%s1 + $0x50] sm:$0xf]
        %v274 = vld [vmem:[%s1 + $0x54] sm:$0xf]
        %v275 = vld [vmem:[%s1 + $0x58] sm:$0xf]
        %v276 = vld [vmem:[%s1 + $0x5c] sm:$0xf]
        %v277 = vld [vmem:[%s1 + $0x60] sm:$0xf]
        %v278 = vld [vmem:[%s1 + $0x64] sm:$0xf]
        %v279 = vld [vmem:[%s1 + $0x68] sm:$0xf]
        %v280 = vld [vmem:[%s1 + $0x6c] sm:$0xf]
        %v281 = vld [vmem:[%s1 + $0x70] sm:$0xf]
        %v282 = vld [vmem:[%s1 + $0x74] sm:$0xf]
        %v283 = vld [vmem:[%s1 + $0x78] sm:$0xf]
        %v284 = vld [vmem:[%s1 + $0x7c] sm:$0xf]
        %v285 = vld [vmem:[%s1 + $0x80] sm:$0xf]
        %v286 = vld [vmem:[%s1 + $0x84] sm:$0xf]
        %v287 = vld [vmem:[%s1 + $0x88] sm:$0xf]
        %v288 = vld [vmem:[%s1 + $0x8c] sm:$0xf]
        %v289 = vld [vmem:[%s1 + $0x90] sm:$0xf]
        %v290 = vld [vmem:[%s1 + $0x94] sm:$0xf]
        %v291 = vld [vmem:[%s1 + $0x98] sm:$0xf]
        %v292 = vld [vmem:[%s1 + $0x9c] sm:$0xf]
        %v293 = vld [vmem:[%s1 + $0xa0] sm:$0xf]
        %v294 = vld [vmem:[%s1 + $0xa4] sm:$0xf]
        %v295 = vld [vmem:[%s1 + $0xa8] sm:$0xf]
        %v296 = vld [vmem:[%s1 + $0xac] sm:$0xf]
        %v297 = vld [vmem:[%s1 + $0xb0] sm:$0xf]
        %v298 = vld [vmem:[%s1 + $0xb4] sm:$0xf]
        %v299 = vld [vmem:[%s1 + $0xb8] sm:$0xf]
        %v300 = vld [vmem:[%s1 + $0xbc] sm:$0xf]
        %v301 = vld [vmem:[%s1 + $0xc0] sm:$0xf]
        %v302 = vld [vmem:[%s1 + $0xc4] sm:$0xf]
        %v303 = vld [vmem:[%s1 + $0xc8] sm:$0xf]
        %v304 = vld [vmem:[%s1 + $0xcc] sm:$0xf]
        %v305 = vld [vmem:[%s1 + $0xd0] sm:$0xf]
        %v306 = vld [vmem:[%s1 + $0xd4] sm:$0xf]
        %v307 = vld [vmem:[%s1 + $0xd8] sm:$0xf]
        %v308 = vld [vmem:[%s1 + $0xdc] sm:$0xf]
        %v309 = vld [vmem:[%s1 + $0xe0] sm:$0xf]
        %v310 = vld [vmem:[%s1 + $0xe4] sm:$0xf]
        %v311 = vld [vmem:[%s1 + $0xe8] sm:$0xf]
        %v312 = vld [vmem:[%s1 + $0xec] sm:$0xf]
        %v313 = vld [vmem:[%s1 + $0xf0] sm:$0xf]
        %v314 = vld [vmem:[%s1 + $0xf4] sm:$0xf]
        %v315 = vld [vmem:[%s1 + $0xf8] sm:$0xf]
        %v316 = vld [vmem:[%s1 + $0xfc] sm:$0xf]
        %v319 = vunpack.c.l.b16 %v251
        %v320 = vunpack.c.l.b16 %v252
        %v321 = vpack.c.b16 %v320, %v319
        %v330 = vunpack.c.l.b16 %v253
        %v331 = vunpack.c.l.b16 %v254
        %v332 = vunpack.c.l.b16 %v255
        %v333 = vunpack.c.l.b16 %v256
        %v334 = vunpack.c.l.b16 %v257
        %v335 = vunpack.c.l.b16 %v258
        %v336 = vunpack.c.l.b16 %v259
        %v337 = vunpack.c.l.b16 %v260
        %v338 = vpack.c.b16 %v331, %v330
        %v339 = vpack.c.b16 %v333, %v332
        %v340 = vpack.c.b16 %v335, %v334
        %v341 = vpack.c.b16 %v337, %v336
        %vm346 = vcmask 523264
        %v348 = vsel %vm346, %v321, 0
        %350 = vmatpush.bf16.msra.mxu0 0
        %351 = vmatpush.bf16.msra.mxu0 0
        %352 = vmatpush.bf16.msra.mxu0 0
        %353 = vmatpush.bf16.msra.mxu0 0
        %354 = vmatpush.bf16.msra.mxu0 %v341
        %355 = vmatpush.bf16.msra.mxu0 %v340
        %356 = vmatpush.bf16.msra.mxu0 %v339
        %357 = vmatpush.bf16.msra.mxu0 %v338
        %358 = vmatmul.bf16.gmra.mxu0 %v348
        %v359 = vpop.f32.mrf.mxu0
        %v360 = vadd.f32 0.0, %v359
        %v361 = vpop.f32.mrf.mxu0
        %v362 = vadd.f32 0.0, %v361
        %363 = vdwg.mxu0
        %v372 = vunpack.c.l.b16 %v261
        %v373 = vunpack.c.l.b16 %v262
        %v374 = vunpack.c.l.b16 %v263
        %v375 = vunpack.c.l.b16 %v264
        %v376 = vunpack.c.l.b16 %v265
        %v377 = vunpack.c.l.b16 %v266
        %v378 = vunpack.c.l.b16 %v267
        %v379 = vunpack.c.l.b16 %v268
        %v380 = vpack.c.b16 %v373, %v372
        %v381 = vpack.c.b16 %v375, %v374
        %v382 = vpack.c.b16 %v377, %v376
        %v383 = vpack.c.b16 %v379, %v378
        %388 = vmatpush.bf16.msra.mxu0 0
        %389 = vmatpush.bf16.msra.mxu0 0
        %390 = vmatpush.bf16.msra.mxu0 0
        %391 = vmatpush.bf16.msra.mxu0 0
        %392 = vmatpush.bf16.msra.mxu0 %v383
        %393 = vmatpush.bf16.msra.mxu0 %v382
        %394 = vmatpush.bf16.msra.mxu0 %v381
        %395 = vmatpush.bf16.msra.mxu0 %v380
        %396 = vmatmul.bf16.gmra.mxu0 %v348
        %v397 = vpop.f32.mrf.mxu0
        %v398 = vadd.f32 0.0, %v397
        %v399 = vpop.f32.mrf.mxu0
        %v400 = vadd.f32 0.0, %v399
        %401 = vdwg.mxu0
        %v410 = vunpack.c.l.b16 %v269
        %v411 = vunpack.c.l.b16 %v270
        %v412 = vunpack.c.l.b16 %v271
        %v413 = vunpack.c.l.b16 %v272
        %v414 = vunpack.c.l.b16 %v273
        %v415 = vunpack.c.l.b16 %v274
        %v416 = vunpack.c.l.b16 %v275
        %v417 = vunpack.c.l.b16 %v276
        %v418 = vpack.c.b16 %v411, %v410
        %v419 = vpack.c.b16 %v413, %v412
        %v420 = vpack.c.b16 %v415, %v414
        %v421 = vpack.c.b16 %v417, %v416
        %426 = vmatpush.bf16.msra.mxu0 0
        %427 = vmatpush.bf16.msra.mxu0 0
        %428 = vmatpush.bf16.msra.mxu0 0
        %429 = vmatpush.bf16.msra.mxu0 0
        %430 = vmatpush.bf16.msra.mxu0 %v421
        %431 = vmatpush.bf16.msra.mxu0 %v420
        %432 = vmatpush.bf16.msra.mxu0 %v419
        %433 = vmatpush.bf16.msra.mxu0 %v418
        %434 = vmatmul.bf16.gmra.mxu0 %v348
        %v435 = vpop.f32.mrf.mxu0
        %v436 = vadd.f32 0.0, %v435
        %v437 = vpop.f32.mrf.mxu0
        %v438 = vadd.f32 0.0, %v437
        %439 = vdwg.mxu0
        %v448 = vunpack.c.l.b16 %v277
        %v449 = vunpack.c.l.b16 %v278
        %v450 = vunpack.c.l.b16 %v279
        %v451 = vunpack.c.l.b16 %v280
        %v452 = vunpack.c.l.b16 %v281
        %v453 = vunpack.c.l.b16 %v282
        %v454 = vunpack.c.l.b16 %v283
        %v455 = vunpack.c.l.b16 %v284
        %v456 = vpack.c.b16 %v449, %v448
        %v457 = vpack.c.b16 %v451, %v450
        %v458 = vpack.c.b16 %v453, %v452
        %v459 = vpack.c.b16 %v455, %v454
        %464 = vmatpush.bf16.msra.mxu0 0
        %465 = vmatpush.bf16.msra.mxu0 0
        %466 = vmatpush.bf16.msra.mxu0 0
        %467 = vmatpush.bf16.msra.mxu0 0
        %468 = vmatpush.bf16.msra.mxu0 %v459
        %469 = vmatpush.bf16.msra.mxu0 %v458
        %470 = vmatpush.bf16.msra.mxu0 %v457
        %471 = vmatpush.bf16.msra.mxu0 %v456
        %472 = vmatmul.bf16.gmra.mxu0 %v348
        %v473 = vpop.f32.mrf.mxu0
        %v474 = vadd.f32 0.0, %v473
        %v475 = vpop.f32.mrf.mxu0
        %v476 = vadd.f32 0.0, %v475
        %477 = vdwg.mxu0
        %v486 = vunpack.c.l.b16 %v285
        %v487 = vunpack.c.l.b16 %v286
        %v488 = vunpack.c.l.b16 %v287
        %v489 = vunpack.c.l.b16 %v288
        %v490 = vunpack.c.l.b16 %v289
        %v491 = vunpack.c.l.b16 %v290
        %v492 = vunpack.c.l.b16 %v291
        %v493 = vunpack.c.l.b16 %v292
        %v494 = vpack.c.b16 %v487, %v486
        %v495 = vpack.c.b16 %v489, %v488
        %v496 = vpack.c.b16 %v491, %v490
        %v497 = vpack.c.b16 %v493, %v492
        %502 = vmatpush.bf16.msra.mxu0 0
        %503 = vmatpush.bf16.msra.mxu0 0
        %504 = vmatpush.bf16.msra.mxu0 0
        %505 = vmatpush.bf16.msra.mxu0 0
        %506 = vmatpush.bf16.msra.mxu0 %v497
        %507 = vmatpush.bf16.msra.mxu0 %v496
        %508 = vmatpush.bf16.msra.mxu0 %v495
        %509 = vmatpush.bf16.msra.mxu0 %v494
        %510 = vmatmul.bf16.gmra.mxu0 %v348
        %v511 = vpop.f32.mrf.mxu0
        %v512 = vadd.f32 0.0, %v511
        %v513 = vpop.f32.mrf.mxu0
        %v514 = vadd.f32 0.0, %v513
        %515 = vdwg.mxu0
        %v524 = vunpack.c.l.b16 %v293
        %v525 = vunpack.c.l.b16 %v294
        %v526 = vunpack.c.l.b16 %v295
        %v527 = vunpack.c.l.b16 %v296
        %v528 = vunpack.c.l.b16 %v297
        %v529 = vunpack.c.l.b16 %v298
        %v530 = vunpack.c.l.b16 %v299
        %v531 = vunpack.c.l.b16 %v300
        %v532 = vpack.c.b16 %v525, %v524
        %v533 = vpack.c.b16 %v527, %v526
        %v534 = vpack.c.b16 %v529, %v528
        %v535 = vpack.c.b16 %v531, %v530
        %540 = vmatpush.bf16.msra.mxu0 0
        %541 = vmatpush.bf16.msra.mxu0 0
        %542 = vmatpush.bf16.msra.mxu0 0
        %543 = vmatpush.bf16.msra.mxu0 0
        %544 = vmatpush.bf16.msra.mxu0 %v535
        %545 = vmatpush.bf16.msra.mxu0 %v534
        %546 = vmatpush.bf16.msra.mxu0 %v533
        %547 = vmatpush.bf16.msra.mxu0 %v532
        %548 = vmatmul.bf16.gmra.mxu0 %v348
        %v549 = vpop.f32.mrf.mxu0
        %v550 = vadd.f32 0.0, %v549
        %v551 = vpop.f32.mrf.mxu0
        %v552 = vadd.f32 0.0, %v551
        %553 = vdwg.mxu0
        %v562 = vunpack.c.l.b16 %v301
        %v563 = vunpack.c.l.b16 %v302
        %v564 = vunpack.c.l.b16 %v303
        %v565 = vunpack.c.l.b16 %v304
        %v566 = vunpack.c.l.b16 %v305
        %v567 = vunpack.c.l.b16 %v306
        %v568 = vunpack.c.l.b16 %v307
        %v569 = vunpack.c.l.b16 %v308
        %v570 = vpack.c.b16 %v563, %v562
        %v571 = vpack.c.b16 %v565, %v564
        %v572 = vpack.c.b16 %v567, %v566
        %v573 = vpack.c.b16 %v569, %v568
        %578 = vmatpush.bf16.msra.mxu0 0
        %579 = vmatpush.bf16.msra.mxu0 0
        %580 = vmatpush.bf16.msra.mxu0 0
        %581 = vmatpush.bf16.msra.mxu0 0
        %582 = vmatpush.bf16.msra.mxu0 %v573
        %583 = vmatpush.bf16.msra.mxu0 %v572
        %584 = vmatpush.bf16.msra.mxu0 %v571
        %585 = vmatpush.bf16.msra.mxu0 %v570
        %586 = vmatmul.bf16.gmra.mxu0 %v348
        %v587 = vpop.f32.mrf.mxu0
        %v588 = vadd.f32 0.0, %v587
        %v589 = vpop.f32.mrf.mxu0
        %v590 = vadd.f32 0.0, %v589
        %591 = vdwg.mxu0
        %v600 = vunpack.c.l.b16 %v309
        %v601 = vunpack.c.l.b16 %v310
        %v602 = vunpack.c.l.b16 %v311
        %v603 = vunpack.c.l.b16 %v312
        %v604 = vunpack.c.l.b16 %v313
        %v605 = vunpack.c.l.b16 %v314
        %v606 = vunpack.c.l.b16 %v315
        %v607 = vunpack.c.l.b16 %v316
        %v608 = vpack.c.b16 %v601, %v600
        %v609 = vpack.c.b16 %v603, %v602
        %v610 = vpack.c.b16 %v605, %v604
        %v611 = vpack.c.b16 %v607, %v606
        %616 = vmatpush.bf16.msra.mxu0 0
        %617 = vmatpush.bf16.msra.mxu0 0
        %618 = vmatpush.bf16.msra.mxu0 0
        %619 = vmatpush.bf16.msra.mxu0 0
        %620 = vmatpush.bf16.msra.mxu0 %v611
        %621 = vmatpush.bf16.msra.mxu0 %v610
        %622 = vmatpush.bf16.msra.mxu0 %v609
        %623 = vmatpush.bf16.msra.mxu0 %v608
        %624 = vmatmul.bf16.gmra.mxu0 %v348
        %v625 = vpop.f32.mrf.mxu0
        %v626 = vadd.f32 0.0, %v625
        %v627 = vpop.f32.mrf.mxu0
        %v628 = vadd.f32 0.0, %v627
        %629 = vdwg.mxu0
        %v630 = vld [vmem:[%s2] sm:$0xf]
        %v631 = vld [vmem:[%s2 + $0x4] sm:$0xf]
        %v632 = vld [vmem:[%s2 + $0x8] sm:$0xf]
        %v633 = vld [vmem:[%s2 + $0xc] sm:$0xf]
        %v634 = vld [vmem:[%s2 + $0x10] sm:$0xf]
        %v635 = vld [vmem:[%s2 + $0x14] sm:$0xf]
        %v636 = vld [vmem:[%s2 + $0x18] sm:$0xf]
        %v637 = vld [vmem:[%s2 + $0x1c] sm:$0xf]
        %v638 = vld [vmem:[%s2 + $0x20] sm:$0xf]
        %v639 = vld [vmem:[%s2 + $0x24] sm:$0xf]
        %v640 = vld [vmem:[%s2 + $0x28] sm:$0xf]
        %v641 = vld [vmem:[%s2 + $0x2c] sm:$0xf]
        %v642 = vld [vmem:[%s2 + $0x30] sm:$0xf]
        %v643 = vld [vmem:[%s2 + $0x34] sm:$0xf]
        %v644 = vld [vmem:[%s2 + $0x38] sm:$0xf]
        %v645 = vld [vmem:[%s2 + $0x3c] sm:$0xf]
        %v646 = vld [vmem:[%s2 + $0x40] sm:$0xf]
        %v647 = vld [vmem:[%s2 + $0x44] sm:$0xf]
        %v648 = vld [vmem:[%s2 + $0x48] sm:$0xf]
        %v649 = vld [vmem:[%s2 + $0x4c] sm:$0xf]
        %v650 = vld [vmem:[%s2 + $0x50] sm:$0xf]
        %v651 = vld [vmem:[%s2 + $0x54] sm:$0xf]
        %v652 = vld [vmem:[%s2 + $0x58] sm:$0xf]
        %v653 = vld [vmem:[%s2 + $0x5c] sm:$0xf]
        %v654 = vld [vmem:[%s2 + $0x60] sm:$0xf]
        %v655 = vld [vmem:[%s2 + $0x64] sm:$0xf]
        %v656 = vld [vmem:[%s2 + $0x68] sm:$0xf]
        %v657 = vld [vmem:[%s2 + $0x6c] sm:$0xf]
        %v658 = vld [vmem:[%s2 + $0x70] sm:$0xf]
        %v659 = vld [vmem:[%s2 + $0x74] sm:$0xf]
        %v660 = vld [vmem:[%s2 + $0x78] sm:$0xf]
        %v661 = vld [vmem:[%s2 + $0x7c] sm:$0xf]
        %v662 = vld [vmem:[%s2 + $0x80] sm:$0xf]
        %v663 = vld [vmem:[%s2 + $0x84] sm:$0xf]
        %v664 = vld [vmem:[%s2 + $0x88] sm:$0xf]
        %v665 = vld [vmem:[%s2 + $0x8c] sm:$0xf]
        %v666 = vld [vmem:[%s2 + $0x90] sm:$0xf]
        %v667 = vld [vmem:[%s2 + $0x94] sm:$0xf]
        %v668 = vld [vmem:[%s2 + $0x98] sm:$0xf]
        %v669 = vld [vmem:[%s2 + $0x9c] sm:$0xf]
        %v670 = vld [vmem:[%s2 + $0xa0] sm:$0xf]
        %v671 = vld [vmem:[%s2 + $0xa4] sm:$0xf]
        %v672 = vld [vmem:[%s2 + $0xa8] sm:$0xf]
        %v673 = vld [vmem:[%s2 + $0xac] sm:$0xf]
        %v674 = vld [vmem:[%s2 + $0xb0] sm:$0xf]
        %v675 = vld [vmem:[%s2 + $0xb4] sm:$0xf]
        %v676 = vld [vmem:[%s2 + $0xb8] sm:$0xf]
        %v677 = vld [vmem:[%s2 + $0xbc] sm:$0xf]
        %v678 = vld [vmem:[%s2 + $0xc0] sm:$0xf]
        %v679 = vld [vmem:[%s2 + $0xc4] sm:$0xf]
        %v680 = vld [vmem:[%s2 + $0xc8] sm:$0xf]
        %v681 = vld [vmem:[%s2 + $0xcc] sm:$0xf]
        %v682 = vld [vmem:[%s2 + $0xd0] sm:$0xf]
        %v683 = vld [vmem:[%s2 + $0xd4] sm:$0xf]
        %v684 = vld [vmem:[%s2 + $0xd8] sm:$0xf]
        %v685 = vld [vmem:[%s2 + $0xdc] sm:$0xf]
        %v686 = vld [vmem:[%s2 + $0xe0] sm:$0xf]
        %v687 = vld [vmem:[%s2 + $0xe4] sm:$0xf]
        %v688 = vld [vmem:[%s2 + $0xe8] sm:$0xf]
        %v689 = vld [vmem:[%s2 + $0xec] sm:$0xf]
        %v690 = vld [vmem:[%s2 + $0xf0] sm:$0xf]
        %v691 = vld [vmem:[%s2 + $0xf4] sm:$0xf]
        %v692 = vld [vmem:[%s2 + $0xf8] sm:$0xf]
        %v693 = vld [vmem:[%s2 + $0xfc] sm:$0xf]
        %v702 = vunpack.c.l.b16 %v630
        %v703 = vunpack.c.l.b16 %v631
        %v704 = vunpack.c.l.b16 %v632
        %v705 = vunpack.c.l.b16 %v633
        %v706 = vunpack.c.l.b16 %v634
        %v707 = vunpack.c.l.b16 %v635
        %v708 = vunpack.c.l.b16 %v636
        %v709 = vunpack.c.l.b16 %v637
        %v710 = vpack.c.b16 %v703, %v702
        %v711 = vpack.c.b16 %v705, %v704
        %v712 = vpack.c.b16 %v707, %v706
        %v713 = vpack.c.b16 %v709, %v708
        %718 = vmatpush.bf16.msra.mxu0 0
        %719 = vmatpush.bf16.msra.mxu0 0
        %720 = vmatpush.bf16.msra.mxu0 0
        %721 = vmatpush.bf16.msra.mxu0 0
        %722 = vmatpush.bf16.msra.mxu0 %v713
        %723 = vmatpush.bf16.msra.mxu0 %v712
        %724 = vmatpush.bf16.msra.mxu0 %v711
        %725 = vmatpush.bf16.msra.mxu0 %v710
        %726 = vmatmul.bf16.gmra.mxu0 %v348
        %v727 = vpop.f32.mrf.mxu0
        %v728 = vadd.f32 0.0, %v727
        %v729 = vpop.f32.mrf.mxu0
        %v730 = vadd.f32 0.0, %v729
        %731 = vdwg.mxu0
        %v740 = vunpack.c.l.b16 %v638
        %v741 = vunpack.c.l.b16 %v639
        %v742 = vunpack.c.l.b16 %v640
        %v743 = vunpack.c.l.b16 %v641
        %v744 = vunpack.c.l.b16 %v642
        %v745 = vunpack.c.l.b16 %v643
        %v746 = vunpack.c.l.b16 %v644
        %v747 = vunpack.c.l.b16 %v645
        %v748 = vpack.c.b16 %v741, %v740
        %v749 = vpack.c.b16 %v743, %v742
        %v750 = vpack.c.b16 %v745, %v744
        %v751 = vpack.c.b16 %v747, %v746
        %756 = vmatpush.bf16.msra.mxu0 0
        %757 = vmatpush.bf16.msra.mxu0 0
        %758 = vmatpush.bf16.msra.mxu0 0
        %759 = vmatpush.bf16.msra.mxu0 0
        %760 = vmatpush.bf16.msra.mxu0 %v751
        %761 = vmatpush.bf16.msra.mxu0 %v750
        %762 = vmatpush.bf16.msra.mxu0 %v749
        %763 = vmatpush.bf16.msra.mxu0 %v748
        %764 = vmatmul.bf16.gmra.mxu0 %v348
        %v765 = vpop.f32.mrf.mxu0
        %v766 = vadd.f32 0.0, %v765
        %v767 = vpop.f32.mrf.mxu0
        %v768 = vadd.f32 0.0, %v767
        %769 = vdwg.mxu0
        %v778 = vunpack.c.l.b16 %v646
        %v779 = vunpack.c.l.b16 %v647
        %v780 = vunpack.c.l.b16 %v648
        %v781 = vunpack.c.l.b16 %v649
        %v782 = vunpack.c.l.b16 %v650
        %v783 = vunpack.c.l.b16 %v651
        %v784 = vunpack.c.l.b16 %v652
        %v785 = vunpack.c.l.b16 %v653
        %v786 = vpack.c.b16 %v779, %v778
        %v787 = vpack.c.b16 %v781, %v780
        %v788 = vpack.c.b16 %v783, %v782
        %v789 = vpack.c.b16 %v785, %v784
        %794 = vmatpush.bf16.msra.mxu0 0
        %795 = vmatpush.bf16.msra.mxu0 0
        %796 = vmatpush.bf16.msra.mxu0 0
        %797 = vmatpush.bf16.msra.mxu0 0
        %798 = vmatpush.bf16.msra.mxu0 %v789
        %799 = vmatpush.bf16.msra.mxu0 %v788
        %800 = vmatpush.bf16.msra.mxu0 %v787
        %801 = vmatpush.bf16.msra.mxu0 %v786
        %802 = vmatmul.bf16.gmra.mxu0 %v348
        %v803 = vpop.f32.mrf.mxu0
        %v804 = vadd.f32 0.0, %v803
        %v805 = vpop.f32.mrf.mxu0
        %v806 = vadd.f32 0.0, %v805
        %807 = vdwg.mxu0
        %v816 = vunpack.c.l.b16 %v654
        %v817 = vunpack.c.l.b16 %v655
        %v818 = vunpack.c.l.b16 %v656
        %v819 = vunpack.c.l.b16 %v657
        %v820 = vunpack.c.l.b16 %v658
        %v821 = vunpack.c.l.b16 %v659
        %v822 = vunpack.c.l.b16 %v660
        %v823 = vunpack.c.l.b16 %v661
        %v824 = vpack.c.b16 %v817, %v816
        %v825 = vpack.c.b16 %v819, %v818
        %v826 = vpack.c.b16 %v821, %v820
        %v827 = vpack.c.b16 %v823, %v822
        %832 = vmatpush.bf16.msra.mxu0 0
        %833 = vmatpush.bf16.msra.mxu0 0
        %834 = vmatpush.bf16.msra.mxu0 0
        %835 = vmatpush.bf16.msra.mxu0 0
        %836 = vmatpush.bf16.msra.mxu0 %v827
        %837 = vmatpush.bf16.msra.mxu0 %v826
        %838 = vmatpush.bf16.msra.mxu0 %v825
        %839 = vmatpush.bf16.msra.mxu0 %v824
        %840 = vmatmul.bf16.gmra.mxu0 %v348
        %v841 = vpop.f32.mrf.mxu0
        %v842 = vadd.f32 0.0, %v841
        %v843 = vpop.f32.mrf.mxu0
        %v844 = vadd.f32 0.0, %v843
        %845 = vdwg.mxu0
        %v854 = vunpack.c.l.b16 %v662
        %v855 = vunpack.c.l.b16 %v663
        %v856 = vunpack.c.l.b16 %v664
        %v857 = vunpack.c.l.b16 %v665
        %v858 = vunpack.c.l.b16 %v666
        %v859 = vunpack.c.l.b16 %v667
        %v860 = vunpack.c.l.b16 %v668
        %v861 = vunpack.c.l.b16 %v669
        %v862 = vpack.c.b16 %v855, %v854
        %v863 = vpack.c.b16 %v857, %v856
        %v864 = vpack.c.b16 %v859, %v858
        %v865 = vpack.c.b16 %v861, %v860
        %870 = vmatpush.bf16.msra.mxu0 0
        %871 = vmatpush.bf16.msra.mxu0 0
        %872 = vmatpush.bf16.msra.mxu0 0
        %873 = vmatpush.bf16.msra.mxu0 0
        %874 = vmatpush.bf16.msra.mxu0 %v865
        %875 = vmatpush.bf16.msra.mxu0 %v864
        %876 = vmatpush.bf16.msra.mxu0 %v863
        %877 = vmatpush.bf16.msra.mxu0 %v862
        %878 = vmatmul.bf16.gmra.mxu0 %v348
        %v879 = vpop.f32.mrf.mxu0
        %v880 = vadd.f32 0.0, %v879
        %v881 = vpop.f32.mrf.mxu0
        %v882 = vadd.f32 0.0, %v881
        %883 = vdwg.mxu0
        %v892 = vunpack.c.l.b16 %v670
        %v893 = vunpack.c.l.b16 %v671
        %v894 = vunpack.c.l.b16 %v672
        %v895 = vunpack.c.l.b16 %v673
        %v896 = vunpack.c.l.b16 %v674
        %v897 = vunpack.c.l.b16 %v675
        %v898 = vunpack.c.l.b16 %v676
        %v899 = vunpack.c.l.b16 %v677
        %v900 = vpack.c.b16 %v893, %v892
        %v901 = vpack.c.b16 %v895, %v894
        %v902 = vpack.c.b16 %v897, %v896
        %v903 = vpack.c.b16 %v899, %v898
        %908 = vmatpush.bf16.msra.mxu0 0
        %909 = vmatpush.bf16.msra.mxu0 0
        %910 = vmatpush.bf16.msra.mxu0 0
        %911 = vmatpush.bf16.msra.mxu0 0
        %912 = vmatpush.bf16.msra.mxu0 %v903
        %913 = vmatpush.bf16.msra.mxu0 %v902
        %914 = vmatpush.bf16.msra.mxu0 %v901
        %915 = vmatpush.bf16.msra.mxu0 %v900
        %916 = vmatmul.bf16.gmra.mxu0 %v348
        %v917 = vpop.f32.mrf.mxu0
        %v918 = vadd.f32 0.0, %v917
        %v919 = vpop.f32.mrf.mxu0
        %v920 = vadd.f32 0.0, %v919
        %921 = vdwg.mxu0
        %v930 = vunpack.c.l.b16 %v678
        %v931 = vunpack.c.l.b16 %v679
        %v932 = vunpack.c.l.b16 %v680
        %v933 = vunpack.c.l.b16 %v681
        %v934 = vunpack.c.l.b16 %v682
        %v935 = vunpack.c.l.b16 %v683
        %v936 = vunpack.c.l.b16 %v684
        %v937 = vunpack.c.l.b16 %v685
        %v938 = vpack.c.b16 %v931, %v930
        %v939 = vpack.c.b16 %v933, %v932
        %v940 = vpack.c.b16 %v935, %v934
        %v941 = vpack.c.b16 %v937, %v936
        %946 = vmatpush.bf16.msra.mxu0 0
        %947 = vmatpush.bf16.msra.mxu0 0
        %948 = vmatpush.bf16.msra.mxu0 0
        %949 = vmatpush.bf16.msra.mxu0 0
        %950 = vmatpush.bf16.msra.mxu0 %v941
        %951 = vmatpush.bf16.msra.mxu0 %v940
        %952 = vmatpush.bf16.msra.mxu0 %v939
        %953 = vmatpush.bf16.msra.mxu0 %v938
        %954 = vmatmul.bf16.gmra.mxu0 %v348
        %v955 = vpop.f32.mrf.mxu0
        %v956 = vadd.f32 0.0, %v955
        %v957 = vpop.f32.mrf.mxu0
        %v958 = vadd.f32 0.0, %v957
        %959 = vdwg.mxu0
        %v968 = vunpack.c.l.b16 %v686
        %v969 = vunpack.c.l.b16 %v687
        %v970 = vunpack.c.l.b16 %v688
        %v971 = vunpack.c.l.b16 %v689
        %v972 = vunpack.c.l.b16 %v690
        %v973 = vunpack.c.l.b16 %v691
        %v974 = vunpack.c.l.b16 %v692
        %v975 = vunpack.c.l.b16 %v693
        %v976 = vpack.c.b16 %v969, %v968
        %v977 = vpack.c.b16 %v971, %v970
        %v978 = vpack.c.b16 %v973, %v972
        %v979 = vpack.c.b16 %v975, %v974
        %984 = vmatpush.bf16.msra.mxu0 0
        %985 = vmatpush.bf16.msra.mxu0 0
        %986 = vmatpush.bf16.msra.mxu0 0
        %987 = vmatpush.bf16.msra.mxu0 0
        %988 = vmatpush.bf16.msra.mxu0 %v979
        %989 = vmatpush.bf16.msra.mxu0 %v978
        %990 = vmatpush.bf16.msra.mxu0 %v977
        %991 = vmatpush.bf16.msra.mxu0 %v976
        %992 = vmatmul.bf16.gmra.mxu0 %v348
        %v993 = vpop.f32.mrf.mxu0
        %v994 = vadd.f32 0.0, %v993
        %v995 = vpop.f32.mrf.mxu0
        %v996 = vadd.f32 0.0, %v995
        %997 = vdwg.mxu0
        %v998 = vld [vmem:[%s3] sm:$0xf]
        %v999 = vld [vmem:[%s3 + $0x4] sm:$0xf]
        %v1000 = vld [vmem:[%s3 + $0x8] sm:$0xf]
        %v1001 = vld [vmem:[%s3 + $0xc] sm:$0xf]
        %v1002 = vld [vmem:[%s3 + $0x10] sm:$0xf]
        %v1003 = vld [vmem:[%s3 + $0x14] sm:$0xf]
        %v1004 = vld [vmem:[%s3 + $0x18] sm:$0xf]
        %v1005 = vld [vmem:[%s3 + $0x1c] sm:$0xf]
        %v1006 = vld [vmem:[%s3 + $0x20] sm:$0xf]
        %v1007 = vld [vmem:[%s3 + $0x24] sm:$0xf]
        %v1008 = vld [vmem:[%s3 + $0x28] sm:$0xf]
        %v1009 = vld [vmem:[%s3 + $0x2c] sm:$0xf]
        %v1010 = vld [vmem:[%s3 + $0x30] sm:$0xf]
        %v1011 = vld [vmem:[%s3 + $0x34] sm:$0xf]
        %v1012 = vld [vmem:[%s3 + $0x38] sm:$0xf]
        %v1013 = vld [vmem:[%s3 + $0x3c] sm:$0xf]
        %v1014 = vld [vmem:[%s3 + $0x40] sm:$0xf]
        %v1015 = vld [vmem:[%s3 + $0x44] sm:$0xf]
        %v1016 = vld [vmem:[%s3 + $0x48] sm:$0xf]
        %v1017 = vld [vmem:[%s3 + $0x4c] sm:$0xf]
        %v1018 = vld [vmem:[%s3 + $0x50] sm:$0xf]
        %v1019 = vld [vmem:[%s3 + $0x54] sm:$0xf]
        %v1020 = vld [vmem:[%s3 + $0x58] sm:$0xf]
        %v1021 = vld [vmem:[%s3 + $0x5c] sm:$0xf]
        %v1022 = vld [vmem:[%s3 + $0x60] sm:$0xf]
        %v1023 = vld [vmem:[%s3 + $0x64] sm:$0xf]
        %v1024 = vld [vmem:[%s3 + $0x68] sm:$0xf]
        %v1025 = vld [vmem:[%s3 + $0x6c] sm:$0xf]
        %v1026 = vld [vmem:[%s3 + $0x70] sm:$0xf]
        %v1027 = vld [vmem:[%s3 + $0x74] sm:$0xf]
        %v1028 = vld [vmem:[%s3 + $0x78] sm:$0xf]
        %v1029 = vld [vmem:[%s3 + $0x7c] sm:$0xf]
        %v1030 = vld [vmem:[%s3 + $0x80] sm:$0xf]
        %v1031 = vld [vmem:[%s3 + $0x84] sm:$0xf]
        %v1032 = vld [vmem:[%s3 + $0x88] sm:$0xf]
        %v1033 = vld [vmem:[%s3 + $0x8c] sm:$0xf]
        %v1034 = vld [vmem:[%s3 + $0x90] sm:$0xf]
        %v1035 = vld [vmem:[%s3 + $0x94] sm:$0xf]
        %v1036 = vld [vmem:[%s3 + $0x98] sm:$0xf]
        %v1037 = vld [vmem:[%s3 + $0x9c] sm:$0xf]
        %v1038 = vld [vmem:[%s3 + $0xa0] sm:$0xf]
        %v1039 = vld [vmem:[%s3 + $0xa4] sm:$0xf]
        %v1040 = vld [vmem:[%s3 + $0xa8] sm:$0xf]
        %v1041 = vld [vmem:[%s3 + $0xac] sm:$0xf]
        %v1042 = vld [vmem:[%s3 + $0xb0] sm:$0xf]
        %v1043 = vld [vmem:[%s3 + $0xb4] sm:$0xf]
        %v1044 = vld [vmem:[%s3 + $0xb8] sm:$0xf]
        %v1045 = vld [vmem:[%s3 + $0xbc] sm:$0xf]
        %v1046 = vld [vmem:[%s3 + $0xc0] sm:$0xf]
        %v1047 = vld [vmem:[%s3 + $0xc4] sm:$0xf]
        %v1048 = vld [vmem:[%s3 + $0xc8] sm:$0xf]
        %v1049 = vld [vmem:[%s3 + $0xcc] sm:$0xf]
        %v1050 = vld [vmem:[%s3 + $0xd0] sm:$0xf]
        %v1051 = vld [vmem:[%s3 + $0xd4] sm:$0xf]
        %v1052 = vld [vmem:[%s3 + $0xd8] sm:$0xf]
        %v1053 = vld [vmem:[%s3 + $0xdc] sm:$0xf]
        %v1054 = vld [vmem:[%s3 + $0xe0] sm:$0xf]
        %v1055 = vld [vmem:[%s3 + $0xe4] sm:$0xf]
        %v1056 = vld [vmem:[%s3 + $0xe8] sm:$0xf]
        %v1057 = vld [vmem:[%s3 + $0xec] sm:$0xf]
        %v1058 = vld [vmem:[%s3 + $0xf0] sm:$0xf]
        %v1059 = vld [vmem:[%s3 + $0xf4] sm:$0xf]
        %v1060 = vld [vmem:[%s3 + $0xf8] sm:$0xf]
        %v1061 = vld [vmem:[%s3 + $0xfc] sm:$0xf]
        %v1070 = vunpack.c.l.b16 %v998
        %v1071 = vunpack.c.l.b16 %v999
        %v1072 = vunpack.c.l.b16 %v1000
        %v1073 = vunpack.c.l.b16 %v1001
        %v1074 = vunpack.c.l.b16 %v1002
        %v1075 = vunpack.c.l.b16 %v1003
        %v1076 = vunpack.c.l.b16 %v1004
        %v1077 = vunpack.c.l.b16 %v1005
        %v1078 = vpack.c.b16 %v1071, %v1070
        %v1079 = vpack.c.b16 %v1073, %v1072
        %v1080 = vpack.c.b16 %v1075, %v1074
        %v1081 = vpack.c.b16 %v1077, %v1076
        %1086 = vmatpush.bf16.msra.mxu0 0
        %1087 = vmatpush.bf16.msra.mxu0 0
        %1088 = vmatpush.bf16.msra.mxu0 0
        %1089 = vmatpush.bf16.msra.mxu0 0
        %1090 = vmatpush.bf16.msra.mxu0 %v1081
        %1091 = vmatpush.bf16.msra.mxu0 %v1080
        %1092 = vmatpush.bf16.msra.mxu0 %v1079
        %1093 = vmatpush.bf16.msra.mxu0 %v1078
        %1094 = vmatmul.bf16.gmra.mxu0 %v348
        %v1095 = vpop.f32.mrf.mxu0
        %v1096 = vadd.f32 0.0, %v1095
        %v1097 = vpop.f32.mrf.mxu0
        %v1098 = vadd.f32 0.0, %v1097
        %1099 = vdwg.mxu0
        %v1108 = vunpack.c.l.b16 %v1006
        %v1109 = vunpack.c.l.b16 %v1007
        %v1110 = vunpack.c.l.b16 %v1008
        %v1111 = vunpack.c.l.b16 %v1009
        %v1112 = vunpack.c.l.b16 %v1010
        %v1113 = vunpack.c.l.b16 %v1011
        %v1114 = vunpack.c.l.b16 %v1012
        %v1115 = vunpack.c.l.b16 %v1013
        %v1116 = vpack.c.b16 %v1109, %v1108
        %v1117 = vpack.c.b16 %v1111, %v1110
        %v1118 = vpack.c.b16 %v1113, %v1112
        %v1119 = vpack.c.b16 %v1115, %v1114
        %1124 = vmatpush.bf16.msra.mxu0 0
        %1125 = vmatpush.bf16.msra.mxu0 0
        %1126 = vmatpush.bf16.msra.mxu0 0
        %1127 = vmatpush.bf16.msra.mxu0 0
        %1128 = vmatpush.bf16.msra.mxu0 %v1119
        %1129 = vmatpush.bf16.msra.mxu0 %v1118
        %1130 = vmatpush.bf16.msra.mxu0 %v1117
        %1131 = vmatpush.bf16.msra.mxu0 %v1116
        %1132 = vmatmul.bf16.gmra.mxu0 %v348
        %v1133 = vpop.f32.mrf.mxu0
        %v1134 = vadd.f32 0.0, %v1133
        %v1135 = vpop.f32.mrf.mxu0
        %v1136 = vadd.f32 0.0, %v1135
        %1137 = vdwg.mxu0
        %v1146 = vunpack.c.l.b16 %v1014
        %v1147 = vunpack.c.l.b16 %v1015
        %v1148 = vunpack.c.l.b16 %v1016
        %v1149 = vunpack.c.l.b16 %v1017
        %v1150 = vunpack.c.l.b16 %v1018
        %v1151 = vunpack.c.l.b16 %v1019
        %v1152 = vunpack.c.l.b16 %v1020
        %v1153 = vunpack.c.l.b16 %v1021
        %v1154 = vpack.c.b16 %v1147, %v1146
        %v1155 = vpack.c.b16 %v1149, %v1148
        %v1156 = vpack.c.b16 %v1151, %v1150
        %v1157 = vpack.c.b16 %v1153, %v1152
        %1162 = vmatpush.bf16.msra.mxu0 0
        %1163 = vmatpush.bf16.msra.mxu0 0
        %1164 = vmatpush.bf16.msra.mxu0 0
        %1165 = vmatpush.bf16.msra.mxu0 0
        %1166 = vmatpush.bf16.msra.mxu0 %v1157
        %1167 = vmatpush.bf16.msra.mxu0 %v1156
        %1168 = vmatpush.bf16.msra.mxu0 %v1155
        %1169 = vmatpush.bf16.msra.mxu0 %v1154
        %1170 = vmatmul.bf16.gmra.mxu0 %v348
        %v1171 = vpop.f32.mrf.mxu0
        %v1172 = vadd.f32 0.0, %v1171
        %v1173 = vpop.f32.mrf.mxu0
        %v1174 = vadd.f32 0.0, %v1173
        %1175 = vdwg.mxu0
        %v1184 = vunpack.c.l.b16 %v1022
        %v1185 = vunpack.c.l.b16 %v1023
        %v1186 = vunpack.c.l.b16 %v1024
        %v1187 = vunpack.c.l.b16 %v1025
        %v1188 = vunpack.c.l.b16 %v1026
        %v1189 = vunpack.c.l.b16 %v1027
        %v1190 = vunpack.c.l.b16 %v1028
        %v1191 = vunpack.c.l.b16 %v1029
        %v1192 = vpack.c.b16 %v1185, %v1184
        %v1193 = vpack.c.b16 %v1187, %v1186
        %v1194 = vpack.c.b16 %v1189, %v1188
        %v1195 = vpack.c.b16 %v1191, %v1190
        %1200 = vmatpush.bf16.msra.mxu0 0
        %1201 = vmatpush.bf16.msra.mxu0 0
        %1202 = vmatpush.bf16.msra.mxu0 0
        %1203 = vmatpush.bf16.msra.mxu0 0
        %1204 = vmatpush.bf16.msra.mxu0 %v1195
        %1205 = vmatpush.bf16.msra.mxu0 %v1194
        %1206 = vmatpush.bf16.msra.mxu0 %v1193
        %1207 = vmatpush.bf16.msra.mxu0 %v1192
        %1208 = vmatmul.bf16.gmra.mxu0 %v348
        %v1209 = vpop.f32.mrf.mxu0
        %v1210 = vadd.f32 0.0, %v1209
        %v1211 = vpop.f32.mrf.mxu0
        %v1212 = vadd.f32 0.0, %v1211
        %1213 = vdwg.mxu0
        %v1222 = vunpack.c.l.b16 %v1030
        %v1223 = vunpack.c.l.b16 %v1031
        %v1224 = vunpack.c.l.b16 %v1032
        %v1225 = vunpack.c.l.b16 %v1033
        %v1226 = vunpack.c.l.b16 %v1034
        %v1227 = vunpack.c.l.b16 %v1035
        %v1228 = vunpack.c.l.b16 %v1036
        %v1229 = vunpack.c.l.b16 %v1037
        %v1230 = vpack.c.b16 %v1223, %v1222
        %v1231 = vpack.c.b16 %v1225, %v1224
        %v1232 = vpack.c.b16 %v1227, %v1226
        %v1233 = vpack.c.b16 %v1229, %v1228
        %1238 = vmatpush.bf16.msra.mxu0 0
        %1239 = vmatpush.bf16.msra.mxu0 0
        %1240 = vmatpush.bf16.msra.mxu0 0
        %1241 = vmatpush.bf16.msra.mxu0 0
        %1242 = vmatpush.bf16.msra.mxu0 %v1233
        %1243 = vmatpush.bf16.msra.mxu0 %v1232
        %1244 = vmatpush.bf16.msra.mxu0 %v1231
        %1245 = vmatpush.bf16.msra.mxu0 %v1230
        %1246 = vmatmul.bf16.gmra.mxu0 %v348
        %v1247 = vpop.f32.mrf.mxu0
        %v1248 = vadd.f32 0.0, %v1247
        %v1249 = vpop.f32.mrf.mxu0
        %v1250 = vadd.f32 0.0, %v1249
        %1251 = vdwg.mxu0
        %v1260 = vunpack.c.l.b16 %v1038
        %v1261 = vunpack.c.l.b16 %v1039
        %v1262 = vunpack.c.l.b16 %v1040
        %v1263 = vunpack.c.l.b16 %v1041
        %v1264 = vunpack.c.l.b16 %v1042
        %v1265 = vunpack.c.l.b16 %v1043
        %v1266 = vunpack.c.l.b16 %v1044
        %v1267 = vunpack.c.l.b16 %v1045
        %v1268 = vpack.c.b16 %v1261, %v1260
        %v1269 = vpack.c.b16 %v1263, %v1262
        %v1270 = vpack.c.b16 %v1265, %v1264
        %v1271 = vpack.c.b16 %v1267, %v1266
        %1276 = vmatpush.bf16.msra.mxu0 0
        %1277 = vmatpush.bf16.msra.mxu0 0
        %1278 = vmatpush.bf16.msra.mxu0 0
        %1279 = vmatpush.bf16.msra.mxu0 0
        %1280 = vmatpush.bf16.msra.mxu0 %v1271
        %1281 = vmatpush.bf16.msra.mxu0 %v1270
        %1282 = vmatpush.bf16.msra.mxu0 %v1269
        %1283 = vmatpush.bf16.msra.mxu0 %v1268
        %1284 = vmatmul.bf16.gmra.mxu0 %v348
        %v1285 = vpop.f32.mrf.mxu0
        %v1286 = vadd.f32 0.0, %v1285
        %v1287 = vpop.f32.mrf.mxu0
        %v1288 = vadd.f32 0.0, %v1287
        %1289 = vdwg.mxu0
        %v1298 = vunpack.c.l.b16 %v1046
        %v1299 = vunpack.c.l.b16 %v1047
        %v1300 = vunpack.c.l.b16 %v1048
        %v1301 = vunpack.c.l.b16 %v1049
        %v1302 = vunpack.c.l.b16 %v1050
        %v1303 = vunpack.c.l.b16 %v1051
        %v1304 = vunpack.c.l.b16 %v1052
        %v1305 = vunpack.c.l.b16 %v1053
        %v1306 = vpack.c.b16 %v1299, %v1298
        %v1307 = vpack.c.b16 %v1301, %v1300
        %v1308 = vpack.c.b16 %v1303, %v1302
        %v1309 = vpack.c.b16 %v1305, %v1304
        %1314 = vmatpush.bf16.msra.mxu0 0
        %1315 = vmatpush.bf16.msra.mxu0 0
        %1316 = vmatpush.bf16.msra.mxu0 0
        %1317 = vmatpush.bf16.msra.mxu0 0
        %1318 = vmatpush.bf16.msra.mxu0 %v1309
        %1319 = vmatpush.bf16.msra.mxu0 %v1308
        %1320 = vmatpush.bf16.msra.mxu0 %v1307
        %1321 = vmatpush.bf16.msra.mxu0 %v1306
        %1322 = vmatmul.bf16.gmra.mxu0 %v348
        %v1323 = vpop.f32.mrf.mxu0
        %v1324 = vadd.f32 0.0, %v1323
        %v1325 = vpop.f32.mrf.mxu0
        %v1326 = vadd.f32 0.0, %v1325
        %1327 = vdwg.mxu0
        %v1336 = vunpack.c.l.b16 %v1054
        %v1337 = vunpack.c.l.b16 %v1055
        %v1338 = vunpack.c.l.b16 %v1056
        %v1339 = vunpack.c.l.b16 %v1057
        %v1340 = vunpack.c.l.b16 %v1058
        %v1341 = vunpack.c.l.b16 %v1059
        %v1342 = vunpack.c.l.b16 %v1060
        %v1343 = vunpack.c.l.b16 %v1061
        %v1344 = vpack.c.b16 %v1337, %v1336
        %v1345 = vpack.c.b16 %v1339, %v1338
        %v1346 = vpack.c.b16 %v1341, %v1340
        %v1347 = vpack.c.b16 %v1343, %v1342
        %1352 = vmatpush.bf16.msra.mxu0 0
        %1353 = vmatpush.bf16.msra.mxu0 0
        %1354 = vmatpush.bf16.msra.mxu0 0
        %1355 = vmatpush.bf16.msra.mxu0 0
        %1356 = vmatpush.bf16.msra.mxu0 %v1347
        %1357 = vmatpush.bf16.msra.mxu0 %v1346
        %1358 = vmatpush.bf16.msra.mxu0 %v1345
        %1359 = vmatpush.bf16.msra.mxu0 %v1344
        %1360 = vmatmul.bf16.gmra.mxu0 %v348
        %v1361 = vpop.f32.mrf.mxu0
        %v1362 = vadd.f32 0.0, %v1361
        %v1363 = vpop.f32.mrf.mxu0
        %v1364 = vadd.f32 0.0, %v1363
        %1365 = vdwg.mxu0
        %v1366 = vmul.f32 %v360, 0.35355338
        %v1367 = vmul.f32 %v362, 0.35355338
        %v1368 = vmul.f32 %v398, 0.35355338
        %v1369 = vmul.f32 %v400, 0.35355338
        %v1370 = vmul.f32 %v436, 0.35355338
        %v1371 = vmul.f32 %v438, 0.35355338
        %v1372 = vmul.f32 %v474, 0.35355338
        %v1373 = vmul.f32 %v476, 0.35355338
        %v1374 = vmul.f32 %v512, 0.35355338
        %v1375 = vmul.f32 %v514, 0.35355338
        %v1376 = vmul.f32 %v550, 0.35355338
        %v1377 = vmul.f32 %v552, 0.35355338
        %v1378 = vmul.f32 %v588, 0.35355338
        %v1379 = vmul.f32 %v590, 0.35355338
        %v1380 = vmul.f32 %v626, 0.35355338
        %v1381 = vmul.f32 %v628, 0.35355338
        %v1382 = vpack.c.bf16 %v1366, %v1366
        %v1383 = vpack.c.bf16 %v1367, %v1367
        %v1384 = vpack.c.bf16 %v1368, %v1368
        %v1385 = vpack.c.bf16 %v1369, %v1369
        %v1386 = vpack.c.bf16 %v1370, %v1370
        %v1387 = vpack.c.bf16 %v1371, %v1371
        %v1388 = vpack.c.bf16 %v1372, %v1372
        %v1389 = vpack.c.bf16 %v1373, %v1373
        %v1390 = vpack.c.bf16 %v1374, %v1374
        %v1391 = vpack.c.bf16 %v1375, %v1375
        %v1392 = vpack.c.bf16 %v1376, %v1376
        %v1393 = vpack.c.bf16 %v1377, %v1377
        %v1394 = vpack.c.bf16 %v1378, %v1378
        %v1395 = vpack.c.bf16 %v1379, %v1379
        %v1396 = vpack.c.bf16 %v1380, %v1380
        %v1397 = vpack.c.bf16 %v1381, %v1381
        %v1398 = vpack.c.bf16 %v728, %v728
        %v1399 = vpack.c.bf16 %v730, %v730
        %v1400 = vpack.c.bf16 %v766, %v766
        %v1401 = vpack.c.bf16 %v768, %v768
        %v1402 = vpack.c.bf16 %v804, %v804
        %v1403 = vpack.c.bf16 %v806, %v806
        %v1404 = vpack.c.bf16 %v842, %v842
        %v1405 = vpack.c.bf16 %v844, %v844
        %v1406 = vpack.c.bf16 %v880, %v880
        %v1407 = vpack.c.bf16 %v882, %v882
        %v1408 = vpack.c.bf16 %v918, %v918
        %v1409 = vpack.c.bf16 %v920, %v920
        %v1410 = vpack.c.bf16 %v956, %v956
        %v1411 = vpack.c.bf16 %v958, %v958
        %v1412 = vpack.c.bf16 %v994, %v994
        %v1413 = vpack.c.bf16 %v996, %v996
        %v1414 = vpack.c.bf16 %v1096, %v1096
        %v1415 = vpack.c.bf16 %v1098, %v1098
        %v1416 = vpack.c.bf16 %v1134, %v1134
        %v1417 = vpack.c.bf16 %v1136, %v1136
        %v1418 = vpack.c.bf16 %v1172, %v1172
        %v1419 = vpack.c.bf16 %v1174, %v1174
        %v1420 = vpack.c.bf16 %v1210, %v1210
        %v1421 = vpack.c.bf16 %v1212, %v1212
        %v1422 = vpack.c.bf16 %v1248, %v1248
        %v1423 = vpack.c.bf16 %v1250, %v1250
        %v1424 = vpack.c.bf16 %v1286, %v1286
        %v1425 = vpack.c.bf16 %v1288, %v1288
        %v1426 = vpack.c.bf16 %v1324, %v1324
        %v1427 = vpack.c.bf16 %v1326, %v1326
        %v1428 = vpack.c.bf16 %v1362, %v1362
        %v1429 = vpack.c.bf16 %v1364, %v1364
        %v1432 = vunpack.c.l.b16 %v1382
        %v1433 = vunpack.c.l.b16 %v1383
        %v1434 = vpack.c.b16 %v1433, %v1432
        %v1437 = vunpack.c.l.b16 %v1398
        %v1438 = vunpack.c.l.b16 %v1399
        %v1439 = vpack.c.b16 %v1438, %v1437
        %vm1440 = vcmask 64512
        %v1442 = vsel %vm1440, %v1434, 0
        %v1445 = vsel %vm1440, %v1439, 0
        %1447 = vmatpush.bf16.xpose.msra.mxu0 0
        %1448 = vmatpush.bf16.xpose.msra.mxu0 0
        %1449 = vmatpush.bf16.xpose.msra.mxu0 0
        %1450 = vmatpush.bf16.xpose.msra.mxu0 0
        %1451 = vmatpush.bf16.xpose.msra.mxu0 0
        %1452 = vmatpush.bf16.xpose.msra.mxu0 0
        %1453 = vmatpush.bf16.xpose.msra.mxu0 0
        %1454 = vmatpush.bf16.xpose.msra.mxu0 %v1445
        %1455 = vmatmul.bf16.gmra.mxu0 %v1442
        %v1456 = vpop.f32.mrf.mxu0
        %v1457 = vadd.f32 0.0, %v1456
        %v1458 = vpop.f32.mrf.mxu0
        %v1459 = vadd.f32 0.0, %v1458
        %1460 = vdwg.mxu0
        %v1463 = vunpack.c.l.b16 %v1384
        %v1464 = vunpack.c.l.b16 %v1385
        %v1465 = vpack.c.b16 %v1464, %v1463
        %v1468 = vunpack.c.l.b16 %v1400
        %v1469 = vunpack.c.l.b16 %v1401
        %v1470 = vpack.c.b16 %v1469, %v1468
        %v1472 = vsel %vm1440, %v1465, 0
        %v1475 = vsel %vm1440, %v1470, 0
        %1477 = vmatpush.bf16.xpose.msra.mxu0 0
        %1478 = vmatpush.bf16.xpose.msra.mxu0 0
        %1479 = vmatpush.bf16.xpose.msra.mxu0 0
        %1480 = vmatpush.bf16.xpose.msra.mxu0 0
        %1481 = vmatpush.bf16.xpose.msra.mxu0 0
        %1482 = vmatpush.bf16.xpose.msra.mxu0 0
        %1483 = vmatpush.bf16.xpose.msra.mxu0 0
        %1484 = vmatpush.bf16.xpose.msra.mxu0 %v1475
        %1485 = vmatmul.bf16.gmra.mxu0 %v1472
        %v1486 = vpop.f32.mrf.mxu0
        %v1487 = vadd.f32 0.0, %v1486
        %v1488 = vpop.f32.mrf.mxu0
        %v1489 = vadd.f32 0.0, %v1488
        %1490 = vdwg.mxu0
        %v1493 = vunpack.c.l.b16 %v1386
        %v1494 = vunpack.c.l.b16 %v1387
        %v1495 = vpack.c.b16 %v1494, %v1493
        %v1498 = vunpack.c.l.b16 %v1402
        %v1499 = vunpack.c.l.b16 %v1403
        %v1500 = vpack.c.b16 %v1499, %v1498
        %v1502 = vsel %vm1440, %v1495, 0
        %v1505 = vsel %vm1440, %v1500, 0
        %1507 = vmatpush.bf16.xpose.msra.mxu0 0
        %1508 = vmatpush.bf16.xpose.msra.mxu0 0
        %1509 = vmatpush.bf16.xpose.msra.mxu0 0
        %1510 = vmatpush.bf16.xpose.msra.mxu0 0
        %1511 = vmatpush.bf16.xpose.msra.mxu0 0
        %1512 = vmatpush.bf16.xpose.msra.mxu0 0
        %1513 = vmatpush.bf16.xpose.msra.mxu0 0
        %1514 = vmatpush.bf16.xpose.msra.mxu0 %v1505
        %1515 = vmatmul.bf16.gmra.mxu0 %v1502
        %v1516 = vpop.f32.mrf.mxu0
        %v1517 = vadd.f32 0.0, %v1516
        %v1518 = vpop.f32.mrf.mxu0
        %v1519 = vadd.f32 0.0, %v1518
        %1520 = vdwg.mxu0
        %v1523 = vunpack.c.l.b16 %v1388
        %v1524 = vunpack.c.l.b16 %v1389
        %v1525 = vpack.c.b16 %v1524, %v1523
        %v1528 = vunpack.c.l.b16 %v1404
        %v1529 = vunpack.c.l.b16 %v1405
        %v1530 = vpack.c.b16 %v1529, %v1528
        %v1532 = vsel %vm1440, %v1525, 0
        %v1535 = vsel %vm1440, %v1530, 0
        %1537 = vmatpush.bf16.xpose.msra.mxu0 0
        %1538 = vmatpush.bf16.xpose.msra.mxu0 0
        %1539 = vmatpush.bf16.xpose.msra.mxu0 0
        %1540 = vmatpush.bf16.xpose.msra.mxu0 0
        %1541 = vmatpush.bf16.xpose.msra.mxu0 0
        %1542 = vmatpush.bf16.xpose.msra.mxu0 0
        %1543 = vmatpush.bf16.xpose.msra.mxu0 0
        %1544 = vmatpush.bf16.xpose.msra.mxu0 %v1535
        %1545 = vmatmul.bf16.gmra.mxu0 %v1532
        %v1546 = vpop.f32.mrf.mxu0
        %v1547 = vadd.f32 0.0, %v1546
        %v1548 = vpop.f32.mrf.mxu0
        %v1549 = vadd.f32 0.0, %v1548
        %1550 = vdwg.mxu0
        %v1553 = vunpack.c.l.b16 %v1390
        %v1554 = vunpack.c.l.b16 %v1391
        %v1555 = vpack.c.b16 %v1554, %v1553
        %v1558 = vunpack.c.l.b16 %v1406
        %v1559 = vunpack.c.l.b16 %v1407
        %v1560 = vpack.c.b16 %v1559, %v1558
        %v1562 = vsel %vm1440, %v1555, 0
        %v1565 = vsel %vm1440, %v1560, 0
        %1567 = vmatpush.bf16.xpose.msra.mxu0 0
        %1568 = vmatpush.bf16.xpose.msra.mxu0 0
        %1569 = vmatpush.bf16.xpose.msra.mxu0 0
        %1570 = vmatpush.bf16.xpose.msra.mxu0 0
        %1571 = vmatpush.bf16.xpose.msra.mxu0 0
        %1572 = vmatpush.bf16.xpose.msra.mxu0 0
        %1573 = vmatpush.bf16.xpose.msra.mxu0 0
        %1574 = vmatpush.bf16.xpose.msra.mxu0 %v1565
        %1575 = vmatmul.bf16.gmra.mxu0 %v1562
        %v1576 = vpop.f32.mrf.mxu0
        %v1577 = vadd.f32 0.0, %v1576
        %v1578 = vpop.f32.mrf.mxu0
        %v1579 = vadd.f32 0.0, %v1578
        %1580 = vdwg.mxu0
        %v1583 = vunpack.c.l.b16 %v1392
        %v1584 = vunpack.c.l.b16 %v1393
        %v1585 = vpack.c.b16 %v1584, %v1583
        %v1588 = vunpack.c.l.b16 %v1408
        %v1589 = vunpack.c.l.b16 %v1409
        %v1590 = vpack.c.b16 %v1589, %v1588
        %v1592 = vsel %vm1440, %v1585, 0
        %v1595 = vsel %vm1440, %v1590, 0
        %1597 = vmatpush.bf16.xpose.msra.mxu0 0
        %1598 = vmatpush.bf16.xpose.msra.mxu0 0
        %1599 = vmatpush.bf16.xpose.msra.mxu0 0
        %1600 = vmatpush.bf16.xpose.msra.mxu0 0
        %1601 = vmatpush.bf16.xpose.msra.mxu0 0
        %1602 = vmatpush.bf16.xpose.msra.mxu0 0
        %1603 = vmatpush.bf16.xpose.msra.mxu0 0
        %1604 = vmatpush.bf16.xpose.msra.mxu0 %v1595
        %1605 = vmatmul.bf16.gmra.mxu0 %v1592
        %v1606 = vpop.f32.mrf.mxu0
        %v1607 = vadd.f32 0.0, %v1606
        %v1608 = vpop.f32.mrf.mxu0
        %v1609 = vadd.f32 0.0, %v1608
        %1610 = vdwg.mxu0
        %v1613 = vunpack.c.l.b16 %v1394
        %v1614 = vunpack.c.l.b16 %v1395
        %v1615 = vpack.c.b16 %v1614, %v1613
        %v1618 = vunpack.c.l.b16 %v1410
        %v1619 = vunpack.c.l.b16 %v1411
        %v1620 = vpack.c.b16 %v1619, %v1618
        %v1622 = vsel %vm1440, %v1615, 0
        %v1625 = vsel %vm1440, %v1620, 0
        %1627 = vmatpush.bf16.xpose.msra.mxu0 0
        %1628 = vmatpush.bf16.xpose.msra.mxu0 0
        %1629 = vmatpush.bf16.xpose.msra.mxu0 0
        %1630 = vmatpush.bf16.xpose.msra.mxu0 0
        %1631 = vmatpush.bf16.xpose.msra.mxu0 0
        %1632 = vmatpush.bf16.xpose.msra.mxu0 0
        %1633 = vmatpush.bf16.xpose.msra.mxu0 0
        %1634 = vmatpush.bf16.xpose.msra.mxu0 %v1625
        %1635 = vmatmul.bf16.gmra.mxu0 %v1622
        %v1636 = vpop.f32.mrf.mxu0
        %v1637 = vadd.f32 0.0, %v1636
        %v1638 = vpop.f32.mrf.mxu0
        %v1639 = vadd.f32 0.0, %v1638
        %1640 = vdwg.mxu0
        %v1643 = vunpack.c.l.b16 %v1396
        %v1644 = vunpack.c.l.b16 %v1397
        %v1645 = vpack.c.b16 %v1644, %v1643
        %v1648 = vunpack.c.l.b16 %v1412
        %v1649 = vunpack.c.l.b16 %v1413
        %v1650 = vpack.c.b16 %v1649, %v1648
        %v1652 = vsel %vm1440, %v1645, 0
        %v1655 = vsel %vm1440, %v1650, 0
        %1657 = vmatpush.bf16.xpose.msra.mxu0 0
        %1658 = vmatpush.bf16.xpose.msra.mxu0 0
        %1659 = vmatpush.bf16.xpose.msra.mxu0 0
        %1660 = vmatpush.bf16.xpose.msra.mxu0 0
        %1661 = vmatpush.bf16.xpose.msra.mxu0 0
        %1662 = vmatpush.bf16.xpose.msra.mxu0 0
        %1663 = vmatpush.bf16.xpose.msra.mxu0 0
        %1664 = vmatpush.bf16.xpose.msra.mxu0 %v1655
        %1665 = vmatmul.bf16.gmra.mxu0 %v1652
        %v1666 = vpop.f32.mrf.mxu0
        %v1667 = vadd.f32 0.0, %v1666
        %v1668 = vpop.f32.mrf.mxu0
        %v1669 = vadd.f32 0.0, %v1668
        %1670 = vdwg.mxu0
        %vm1671 = vcmask 130048
        %v1672 = vsel %vm1671, %v1457, -inf
        %1673 = vmax.xlane.f32.xlu0 %v1672
        %v1674 = vpop.xlane.xlu0 %1673
        %v1675 = vsel %vm1671, %v1459, -inf
        %1676 = vmax.xlane.f32.xlu0 %v1675
        %v1677 = vpop.xlane.xlu0 %1676
        %v1678 = vsel %vm1671, %v1487, -inf
        %1679 = vmax.xlane.f32.xlu0 %v1678
        %v1680 = vpop.xlane.xlu0 %1679
        %v1681 = vsel %vm1671, %v1489, -inf
        %1682 = vmax.xlane.f32.xlu0 %v1681
        %v1683 = vpop.xlane.xlu0 %1682
        %v1684 = vsel %vm1671, %v1517, -inf
        %1685 = vmax.xlane.f32.xlu0 %v1684
        %v1686 = vpop.xlane.xlu0 %1685
        %v1687 = vsel %vm1671, %v1519, -inf
        %1688 = vmax.xlane.f32.xlu0 %v1687
        %v1689 = vpop.xlane.xlu0 %1688
        %v1690 = vsel %vm1671, %v1547, -inf
        %1691 = vmax.xlane.f32.xlu0 %v1690
        %v1692 = vpop.xlane.xlu0 %1691
        %v1693 = vsel %vm1671, %v1549, -inf
        %1694 = vmax.xlane.f32.xlu0 %v1693
        %v1695 = vpop.xlane.xlu0 %1694
        %v1696 = vsel %vm1671, %v1577, -inf
        %1697 = vmax.xlane.f32.xlu0 %v1696
        %v1698 = vpop.xlane.xlu0 %1697
        %v1699 = vsel %vm1671, %v1579, -inf
        %1700 = vmax.xlane.f32.xlu0 %v1699
        %v1701 = vpop.xlane.xlu0 %1700
        %v1702 = vsel %vm1671, %v1607, -inf
        %1703 = vmax.xlane.f32.xlu0 %v1702
        %v1704 = vpop.xlane.xlu0 %1703
        %v1705 = vsel %vm1671, %v1609, -inf
        %1706 = vmax.xlane.f32.xlu0 %v1705
        %v1707 = vpop.xlane.xlu0 %1706
        %v1708 = vsel %vm1671, %v1637, -inf
        %1709 = vmax.xlane.f32.xlu0 %v1708
        %v1710 = vpop.xlane.xlu0 %1709
        %v1711 = vsel %vm1671, %v1639, -inf
        %1712 = vmax.xlane.f32.xlu0 %v1711
        %v1713 = vpop.xlane.xlu0 %1712
        %v1714 = vsel %vm1671, %v1667, -inf
        %1715 = vmax.xlane.f32.xlu0 %v1714
        %v1716 = vpop.xlane.xlu0 %1715
        %v1717 = vsel %vm1671, %v1669, -inf
        %1718 = vmax.xlane.f32.xlu0 %v1717
        %v1719 = vpop.xlane.xlu0 %1718
        %v1720 = vsub.f32 %v1457, %v1674
        %v1721 = vsub.f32 %v1459, %v1677
        %v1722 = vsub.f32 %v1487, %v1680
        %v1723 = vsub.f32 %v1489, %v1683
        %v1724 = vsub.f32 %v1517, %v1686
        %v1725 = vsub.f32 %v1519, %v1689
        %v1726 = vsub.f32 %v1547, %v1692
        %v1727 = vsub.f32 %v1549, %v1695
        %v1728 = vsub.f32 %v1577, %v1698
        %v1729 = vsub.f32 %v1579, %v1701
        %v1730 = vsub.f32 %v1607, %v1704
        %v1731 = vsub.f32 %v1609, %v1707
        %v1732 = vsub.f32 %v1637, %v1710
        %v1733 = vsub.f32 %v1639, %v1713
        %v1734 = vsub.f32 %v1667, %v1716
        %v1735 = vsub.f32 %v1669, %v1719
        %v1736 = vmul.f32 %v1720, 1.442695
        %v1737 = vpow.pop %v1736
        %v1738 = vmul.f32 %v1721, 1.442695
        %v1739 = vpow.pop %v1738
        %v1740 = vmul.f32 %v1722, 1.442695
        %v1741 = vpow.pop %v1740
        %v1742 = vmul.f32 %v1723, 1.442695
        %v1743 = vpow.pop %v1742
        %v1744 = vmul.f32 %v1724, 1.442695
        %v1745 = vpow.pop %v1744
        %v1746 = vmul.f32 %v1725, 1.442695
        %v1747 = vpow.pop %v1746
        %v1748 = vmul.f32 %v1726, 1.442695
        %v1749 = vpow.pop %v1748
        %v1750 = vmul.f32 %v1727, 1.442695
        %v1751 = vpow.pop %v1750
        %v1752 = vmul.f32 %v1728, 1.442695
        %v1753 = vpow.pop %v1752
        %v1754 = vmul.f32 %v1729, 1.442695
        %v1755 = vpow.pop %v1754
        %v1756 = vmul.f32 %v1730, 1.442695
        %v1757 = vpow.pop %v1756
        %v1758 = vmul.f32 %v1731, 1.442695
        %v1759 = vpow.pop %v1758
        %v1760 = vmul.f32 %v1732, 1.442695
        %v1761 = vpow.pop %v1760
        %v1762 = vmul.f32 %v1733, 1.442695
        %v1763 = vpow.pop %v1762
        %v1764 = vmul.f32 %v1734, 1.442695
        %v1765 = vpow.pop %v1764
        %v1766 = vmul.f32 %v1735, 1.442695
        %v1767 = vpow.pop %v1766
        %v1768 = vsel %vm1671, %v1737, 0.0
        %1769 = vadd.xlane.f32.xlu0 %v1768
        %v1770 = vpop.xlane.xlu0 %1769
        %v1771 = vsel %vm1671, %v1739, 0.0
        %1772 = vadd.xlane.f32.xlu0 %v1771
        %v1773 = vpop.xlane.xlu0 %1772
        %v1774 = vsel %vm1671, %v1741, 0.0
        %1775 = vadd.xlane.f32.xlu0 %v1774
        %v1776 = vpop.xlane.xlu0 %1775
        %v1777 = vsel %vm1671, %v1743, 0.0
        %1778 = vadd.xlane.f32.xlu0 %v1777
        %v1779 = vpop.xlane.xlu0 %1778
        %v1780 = vsel %vm1671, %v1745, 0.0
        %1781 = vadd.xlane.f32.xlu0 %v1780
        %v1782 = vpop.xlane.xlu0 %1781
        %v1783 = vsel %vm1671, %v1747, 0.0
        %1784 = vadd.xlane.f32.xlu0 %v1783
        %v1785 = vpop.xlane.xlu0 %1784
        %v1786 = vsel %vm1671, %v1749, 0.0
        %1787 = vadd.xlane.f32.xlu0 %v1786
        %v1788 = vpop.xlane.xlu0 %1787
        %v1789 = vsel %vm1671, %v1751, 0.0
        %1790 = vadd.xlane.f32.xlu0 %v1789
        %v1791 = vpop.xlane.xlu0 %1790
        %v1792 = vsel %vm1671, %v1753, 0.0
        %1793 = vadd.xlane.f32.xlu0 %v1792
        %v1794 = vpop.xlane.xlu0 %1793
        %v1795 = vsel %vm1671, %v1755, 0.0
        %1796 = vadd.xlane.f32.xlu0 %v1795
        %v1797 = vpop.xlane.xlu0 %1796
        %v1798 = vsel %vm1671, %v1757, 0.0
        %1799 = vadd.xlane.f32.xlu0 %v1798
        %v1800 = vpop.xlane.xlu0 %1799
        %v1801 = vsel %vm1671, %v1759, 0.0
        %1802 = vadd.xlane.f32.xlu0 %v1801
        %v1803 = vpop.xlane.xlu0 %1802
        %v1804 = vsel %vm1671, %v1761, 0.0
        %1805 = vadd.xlane.f32.xlu0 %v1804
        %v1806 = vpop.xlane.xlu0 %1805
        %v1807 = vsel %vm1671, %v1763, 0.0
        %1808 = vadd.xlane.f32.xlu0 %v1807
        %v1809 = vpop.xlane.xlu0 %1808
        %v1810 = vsel %vm1671, %v1765, 0.0
        %1811 = vadd.xlane.f32.xlu0 %v1810
        %v1812 = vpop.xlane.xlu0 %1811
        %v1813 = vsel %vm1671, %v1767, 0.0
        %1814 = vadd.xlane.f32.xlu0 %v1813
        %v1815 = vpop.xlane.xlu0 %1814
        %v1816 = vrcp.pop %v1770
        %v1817 = vrcp.pop %v1773
        %v1818 = vrcp.pop %v1776
        %v1819 = vrcp.pop %v1779
        %v1820 = vrcp.pop %v1782
        %v1821 = vrcp.pop %v1785
        %v1822 = vrcp.pop %v1788
        %v1823 = vrcp.pop %v1791
        %v1824 = vrcp.pop %v1794
        %v1825 = vrcp.pop %v1797
        %v1826 = vrcp.pop %v1800
        %v1827 = vrcp.pop %v1803
        %v1828 = vrcp.pop %v1806
        %v1829 = vrcp.pop %v1809
        %v1830 = vrcp.pop %v1812
        %v1831 = vrcp.pop %v1815
        %v1832 = vmul.f32 %v1737, %v1816
        %v1833 = vmul.f32 %v1739, %v1817
        %v1834 = vmul.f32 %v1741, %v1818
        %v1835 = vmul.f32 %v1743, %v1819
        %v1836 = vmul.f32 %v1745, %v1820
        %v1837 = vmul.f32 %v1747, %v1821
        %v1838 = vmul.f32 %v1749, %v1822
        %v1839 = vmul.f32 %v1751, %v1823
        %v1840 = vmul.f32 %v1753, %v1824
        %v1841 = vmul.f32 %v1755, %v1825
        %v1842 = vmul.f32 %v1757, %v1826
        %v1843 = vmul.f32 %v1759, %v1827
        %v1844 = vmul.f32 %v1761, %v1828
        %v1845 = vmul.f32 %v1763, %v1829
        %v1846 = vmul.f32 %v1765, %v1830
        %v1847 = vmul.f32 %v1767, %v1831
        %v1848 = vpack.c.bf16 %v1832, %v1832
        %v1849 = vpack.c.bf16 %v1833, %v1833
        %v1850 = vpack.c.bf16 %v1834, %v1834
        %v1851 = vpack.c.bf16 %v1835, %v1835
        %v1852 = vpack.c.bf16 %v1836, %v1836
        %v1853 = vpack.c.bf16 %v1837, %v1837
        %v1854 = vpack.c.bf16 %v1838, %v1838
        %v1855 = vpack.c.bf16 %v1839, %v1839
        %v1856 = vpack.c.bf16 %v1840, %v1840
        %v1857 = vpack.c.bf16 %v1841, %v1841
        %v1858 = vpack.c.bf16 %v1842, %v1842
        %v1859 = vpack.c.bf16 %v1843, %v1843
        %v1860 = vpack.c.bf16 %v1844, %v1844
        %v1861 = vpack.c.bf16 %v1845, %v1845
        %v1862 = vpack.c.bf16 %v1846, %v1846
        %v1863 = vpack.c.bf16 %v1847, %v1847
        %v1866 = vunpack.c.l.b16 %v1848
        %v1867 = vunpack.c.l.b16 %v1849
        %v1868 = vpack.c.b16 %v1867, %v1866
        %v1871 = vunpack.c.l.b16 %v1414
        %v1872 = vunpack.c.l.b16 %v1415
        %v1873 = vpack.c.b16 %v1872, %v1871
        %v1876 = vsel %vm1671, %v1868, 0
        %1878 = vmatpush.bf16.msra.mxu0 0
        %1879 = vmatpush.bf16.msra.mxu0 0
        %1880 = vmatpush.bf16.msra.mxu0 0
        %1881 = vmatpush.bf16.msra.mxu0 0
        %1882 = vmatpush.bf16.msra.mxu0 0
        %1883 = vmatpush.bf16.msra.mxu0 0
        %1884 = vmatpush.bf16.msra.mxu0 0
        %1885 = vmatpush.bf16.msra.mxu0 %v1873
        %1886 = vmatmul.bf16.gmra.mxu0 %v1876
        %v1887 = vpop.f32.mrf.mxu0
        %v1888 = vadd.f32 0.0, %v1887
        %v1889 = vpop.f32.mrf.mxu0
        %v1890 = vadd.f32 0.0, %v1889
        %1891 = vdwg.mxu0
        %v1894 = vunpack.c.l.b16 %v1850
        %v1895 = vunpack.c.l.b16 %v1851
        %v1896 = vpack.c.b16 %v1895, %v1894
        %v1899 = vunpack.c.l.b16 %v1416
        %v1900 = vunpack.c.l.b16 %v1417
        %v1901 = vpack.c.b16 %v1900, %v1899
        %v1904 = vsel %vm1671, %v1896, 0
        %1906 = vmatpush.bf16.msra.mxu0 0
        %1907 = vmatpush.bf16.msra.mxu0 0
        %1908 = vmatpush.bf16.msra.mxu0 0
        %1909 = vmatpush.bf16.msra.mxu0 0
        %1910 = vmatpush.bf16.msra.mxu0 0
        %1911 = vmatpush.bf16.msra.mxu0 0
        %1912 = vmatpush.bf16.msra.mxu0 0
        %1913 = vmatpush.bf16.msra.mxu0 %v1901
        %1914 = vmatmul.bf16.gmra.mxu0 %v1904
        %v1915 = vpop.f32.mrf.mxu0
        %v1916 = vadd.f32 0.0, %v1915
        %v1917 = vpop.f32.mrf.mxu0
        %v1918 = vadd.f32 0.0, %v1917
        %1919 = vdwg.mxu0
        %v1922 = vunpack.c.l.b16 %v1852
        %v1923 = vunpack.c.l.b16 %v1853
        %v1924 = vpack.c.b16 %v1923, %v1922
        %v1927 = vunpack.c.l.b16 %v1418
        %v1928 = vunpack.c.l.b16 %v1419
        %v1929 = vpack.c.b16 %v1928, %v1927
        %v1932 = vsel %vm1671, %v1924, 0
        %1934 = vmatpush.bf16.msra.mxu0 0
        %1935 = vmatpush.bf16.msra.mxu0 0
        %1936 = vmatpush.bf16.msra.mxu0 0
        %1937 = vmatpush.bf16.msra.mxu0 0
        %1938 = vmatpush.bf16.msra.mxu0 0
        %1939 = vmatpush.bf16.msra.mxu0 0
        %1940 = vmatpush.bf16.msra.mxu0 0
        %1941 = vmatpush.bf16.msra.mxu0 %v1929
        %1942 = vmatmul.bf16.gmra.mxu0 %v1932
        %v1943 = vpop.f32.mrf.mxu0
        %v1944 = vadd.f32 0.0, %v1943
        %v1945 = vpop.f32.mrf.mxu0
        %v1946 = vadd.f32 0.0, %v1945
        %1947 = vdwg.mxu0
        %v1950 = vunpack.c.l.b16 %v1854
        %v1951 = vunpack.c.l.b16 %v1855
        %v1952 = vpack.c.b16 %v1951, %v1950
        %v1955 = vunpack.c.l.b16 %v1420
        %v1956 = vunpack.c.l.b16 %v1421
        %v1957 = vpack.c.b16 %v1956, %v1955
        %v1960 = vsel %vm1671, %v1952, 0
        %1962 = vmatpush.bf16.msra.mxu0 0
        %1963 = vmatpush.bf16.msra.mxu0 0
        %1964 = vmatpush.bf16.msra.mxu0 0
        %1965 = vmatpush.bf16.msra.mxu0 0
        %1966 = vmatpush.bf16.msra.mxu0 0
        %1967 = vmatpush.bf16.msra.mxu0 0
        %1968 = vmatpush.bf16.msra.mxu0 0
        %1969 = vmatpush.bf16.msra.mxu0 %v1957
        %1970 = vmatmul.bf16.gmra.mxu0 %v1960
        %v1971 = vpop.f32.mrf.mxu0
        %v1972 = vadd.f32 0.0, %v1971
        %v1973 = vpop.f32.mrf.mxu0
        %v1974 = vadd.f32 0.0, %v1973
        %1975 = vdwg.mxu0
        %v1978 = vunpack.c.l.b16 %v1856
        %v1979 = vunpack.c.l.b16 %v1857
        %v1980 = vpack.c.b16 %v1979, %v1978
        %v1983 = vunpack.c.l.b16 %v1422
        %v1984 = vunpack.c.l.b16 %v1423
        %v1985 = vpack.c.b16 %v1984, %v1983
        %v1988 = vsel %vm1671, %v1980, 0
        %1990 = vmatpush.bf16.msra.mxu0 0
        %1991 = vmatpush.bf16.msra.mxu0 0
        %1992 = vmatpush.bf16.msra.mxu0 0
        %1993 = vmatpush.bf16.msra.mxu0 0
        %1994 = vmatpush.bf16.msra.mxu0 0
        %1995 = vmatpush.bf16.msra.mxu0 0
        %1996 = vmatpush.bf16.msra.mxu0 0
        %1997 = vmatpush.bf16.msra.mxu0 %v1985
        %1998 = vmatmul.bf16.gmra.mxu0 %v1988
        %v1999 = vpop.f32.mrf.mxu0
        %v2000 = vadd.f32 0.0, %v1999
        %v2001 = vpop.f32.mrf.mxu0
        %v2002 = vadd.f32 0.0, %v2001
        %2003 = vdwg.mxu0
        %v2006 = vunpack.c.l.b16 %v1858
        %v2007 = vunpack.c.l.b16 %v1859
        %v2008 = vpack.c.b16 %v2007, %v2006
        %v2011 = vunpack.c.l.b16 %v1424
        %v2012 = vunpack.c.l.b16 %v1425
        %v2013 = vpack.c.b16 %v2012, %v2011
        %v2016 = vsel %vm1671, %v2008, 0
        %2018 = vmatpush.bf16.msra.mxu0 0
        %2019 = vmatpush.bf16.msra.mxu0 0
        %2020 = vmatpush.bf16.msra.mxu0 0
        %2021 = vmatpush.bf16.msra.mxu0 0
        %2022 = vmatpush.bf16.msra.mxu0 0
        %2023 = vmatpush.bf16.msra.mxu0 0
        %2024 = vmatpush.bf16.msra.mxu0 0
        %2025 = vmatpush.bf16.msra.mxu0 %v2013
        %2026 = vmatmul.bf16.gmra.mxu0 %v2016
        %v2027 = vpop.f32.mrf.mxu0
        %v2028 = vadd.f32 0.0, %v2027
        %v2029 = vpop.f32.mrf.mxu0
        %v2030 = vadd.f32 0.0, %v2029
        %2031 = vdwg.mxu0
        %v2034 = vunpack.c.l.b16 %v1860
        %v2035 = vunpack.c.l.b16 %v1861
        %v2036 = vpack.c.b16 %v2035, %v2034
        %v2039 = vunpack.c.l.b16 %v1426
        %v2040 = vunpack.c.l.b16 %v1427
        %v2041 = vpack.c.b16 %v2040, %v2039
        %v2044 = vsel %vm1671, %v2036, 0
        %2046 = vmatpush.bf16.msra.mxu0 0
        %2047 = vmatpush.bf16.msra.mxu0 0
        %2048 = vmatpush.bf16.msra.mxu0 0
        %2049 = vmatpush.bf16.msra.mxu0 0
        %2050 = vmatpush.bf16.msra.mxu0 0
        %2051 = vmatpush.bf16.msra.mxu0 0
        %2052 = vmatpush.bf16.msra.mxu0 0
        %2053 = vmatpush.bf16.msra.mxu0 %v2041
        %2054 = vmatmul.bf16.gmra.mxu0 %v2044
        %v2055 = vpop.f32.mrf.mxu0
        %v2056 = vadd.f32 0.0, %v2055
        %v2057 = vpop.f32.mrf.mxu0
        %v2058 = vadd.f32 0.0, %v2057
        %2059 = vdwg.mxu0
        %v2062 = vunpack.c.l.b16 %v1862
        %v2063 = vunpack.c.l.b16 %v1863
        %v2064 = vpack.c.b16 %v2063, %v2062
        %v2067 = vunpack.c.l.b16 %v1428
        %v2068 = vunpack.c.l.b16 %v1429
        %v2069 = vpack.c.b16 %v2068, %v2067
        %v2072 = vsel %vm1671, %v2064, 0
        %2074 = vmatpush.bf16.msra.mxu0 0
        %2075 = vmatpush.bf16.msra.mxu0 0
        %2076 = vmatpush.bf16.msra.mxu0 0
        %2077 = vmatpush.bf16.msra.mxu0 0
        %2078 = vmatpush.bf16.msra.mxu0 0
        %2079 = vmatpush.bf16.msra.mxu0 0
        %2080 = vmatpush.bf16.msra.mxu0 0
        %2081 = vmatpush.bf16.msra.mxu0 %v2069
        %2082 = vmatmul.bf16.gmra.mxu0 %v2072
        %v2083 = vpop.f32.mrf.mxu0
        %v2084 = vadd.f32 0.0, %v2083
        %v2085 = vpop.f32.mrf.mxu0
        %v2086 = vadd.f32 0.0, %v2085
        %2087 = vdwg.mxu0
        %v2088 = vpack.c.bf16 %v1888, %v1888
        %v2089 = vpack.c.bf16 %v1890, %v1890
        %v2090 = vpack.c.bf16 %v1916, %v1916
        %v2091 = vpack.c.bf16 %v1918, %v1918
        %v2092 = vpack.c.bf16 %v1944, %v1944
        %v2093 = vpack.c.bf16 %v1946, %v1946
        %v2094 = vpack.c.bf16 %v1972, %v1972
        %v2095 = vpack.c.bf16 %v1974, %v1974
        %v2096 = vpack.c.bf16 %v2000, %v2000
        %v2097 = vpack.c.bf16 %v2002, %v2002
        %v2098 = vpack.c.bf16 %v2028, %v2028
        %v2099 = vpack.c.bf16 %v2030, %v2030
        %v2100 = vpack.c.bf16 %v2056, %v2056
        %v2101 = vpack.c.bf16 %v2058, %v2058
        %v2102 = vpack.c.bf16 %v2084, %v2084
        %v2103 = vpack.c.bf16 %v2086, %v2086
        %v2104 = vld [vmem:[%s4] sm:$0xf]
        %v2105 = vld [vmem:[%s4 + $0x4] sm:$0xf]
        %v2106 = vld [vmem:[%s4 + $0x8] sm:$0xf]
        %v2107 = vld [vmem:[%s4 + $0xc] sm:$0xf]
        %v2108 = vld [vmem:[%s4 + $0x10] sm:$0xf]
        %v2109 = vld [vmem:[%s4 + $0x14] sm:$0xf]
        %v2110 = vld [vmem:[%s4 + $0x18] sm:$0xf]
        %v2111 = vld [vmem:[%s4 + $0x1c] sm:$0xf]
        %v2114 = vunpack.c.l.b16 %v2088
        %v2115 = vunpack.c.l.b16 %v2089
        %v2116 = vpack.c.b16 %v2115, %v2114
        %v2118 = vsel %vm1440, %v2116, 0
        %vm2120 = vcmask 1043456
        %v2122 = vsel %vm2120, %v2104, 0
        %2124 = vmatpush.bf16.msra.mxu0 0
        %2125 = vmatpush.bf16.msra.mxu0 0
        %2126 = vmatpush.bf16.msra.mxu0 0
        %2127 = vmatpush.bf16.msra.mxu0 0
        %2128 = vmatpush.bf16.msra.mxu0 0
        %2129 = vmatpush.bf16.msra.mxu0 0
        %2130 = vmatpush.bf16.msra.mxu0 0
        %2131 = vmatpush.bf16.msra.mxu0 %v2122
        %2132 = vmatmul.bf16.gmra.mxu0 %v2118
        %v2133 = vpop.f32.mrf.mxu0
        %v2134 = vadd.f32 0.0, %v2133
        %v2135 = vpop.f32.mrf.mxu0
        %v2136 = vadd.f32 0.0, %v2135
        %2137 = vdwg.mxu0
        %v2140 = vunpack.c.l.b16 %v2090
        %v2141 = vunpack.c.l.b16 %v2091
        %v2142 = vpack.c.b16 %v2141, %v2140
        %v2144 = vsel %vm1440, %v2142, 0
        %v2147 = vsel %vm2120, %v2105, 0
        %2149 = vmatpush.bf16.msra.mxu0 0
        %2150 = vmatpush.bf16.msra.mxu0 0
        %2151 = vmatpush.bf16.msra.mxu0 0
        %2152 = vmatpush.bf16.msra.mxu0 0
        %2153 = vmatpush.bf16.msra.mxu0 0
        %2154 = vmatpush.bf16.msra.mxu0 0
        %2155 = vmatpush.bf16.msra.mxu0 0
        %2156 = vmatpush.bf16.msra.mxu0 %v2147
        %2157 = vmatmul.bf16.gmra.mxu0 %v2144
        %v2158 = vpop.f32.mrf.mxu0
        %v2159 = vadd.f32 0.0, %v2158
        %v2160 = vpop.f32.mrf.mxu0
        %v2161 = vadd.f32 0.0, %v2160
        %2162 = vdwg.mxu0
        %v2165 = vunpack.c.l.b16 %v2092
        %v2166 = vunpack.c.l.b16 %v2093
        %v2167 = vpack.c.b16 %v2166, %v2165
        %v2169 = vsel %vm1440, %v2167, 0
        %v2172 = vsel %vm2120, %v2106, 0
        %2174 = vmatpush.bf16.msra.mxu0 0
        %2175 = vmatpush.bf16.msra.mxu0 0
        %2176 = vmatpush.bf16.msra.mxu0 0
        %2177 = vmatpush.bf16.msra.mxu0 0
        %2178 = vmatpush.bf16.msra.mxu0 0
        %2179 = vmatpush.bf16.msra.mxu0 0
        %2180 = vmatpush.bf16.msra.mxu0 0
        %2181 = vmatpush.bf16.msra.mxu0 %v2172
        %2182 = vmatmul.bf16.gmra.mxu0 %v2169
        %v2183 = vpop.f32.mrf.mxu0
        %v2184 = vadd.f32 0.0, %v2183
        %v2185 = vpop.f32.mrf.mxu0
        %v2186 = vadd.f32 0.0, %v2185
        %2187 = vdwg.mxu0
        %v2190 = vunpack.c.l.b16 %v2094
        %v2191 = vunpack.c.l.b16 %v2095
        %v2192 = vpack.c.b16 %v2191, %v2190
        %v2194 = vsel %vm1440, %v2192, 0
        %v2197 = vsel %vm2120, %v2107, 0
        %2199 = vmatpush.bf16.msra.mxu0 0
        %2200 = vmatpush.bf16.msra.mxu0 0
        %2201 = vmatpush.bf16.msra.mxu0 0
        %2202 = vmatpush.bf16.msra.mxu0 0
        %2203 = vmatpush.bf16.msra.mxu0 0
        %2204 = vmatpush.bf16.msra.mxu0 0
        %2205 = vmatpush.bf16.msra.mxu0 0
        %2206 = vmatpush.bf16.msra.mxu0 %v2197
        %2207 = vmatmul.bf16.gmra.mxu0 %v2194
        %v2208 = vpop.f32.mrf.mxu0
        %v2209 = vadd.f32 0.0, %v2208
        %v2210 = vpop.f32.mrf.mxu0
        %v2211 = vadd.f32 0.0, %v2210
        %2212 = vdwg.mxu0
        %v2215 = vunpack.c.l.b16 %v2096
        %v2216 = vunpack.c.l.b16 %v2097
        %v2217 = vpack.c.b16 %v2216, %v2215
        %v2219 = vsel %vm1440, %v2217, 0
        %v2222 = vsel %vm2120, %v2108, 0
        %2224 = vmatpush.bf16.msra.mxu0 0
        %2225 = vmatpush.bf16.msra.mxu0 0
        %2226 = vmatpush.bf16.msra.mxu0 0
        %2227 = vmatpush.bf16.msra.mxu0 0
        %2228 = vmatpush.bf16.msra.mxu0 0
        %2229 = vmatpush.bf16.msra.mxu0 0
        %2230 = vmatpush.bf16.msra.mxu0 0
        %2231 = vmatpush.bf16.msra.mxu0 %v2222
        %2232 = vmatmul.bf16.gmra.mxu0 %v2219
        %v2233 = vpop.f32.mrf.mxu0
        %v2234 = vadd.f32 0.0, %v2233
        %v2235 = vpop.f32.mrf.mxu0
        %v2236 = vadd.f32 0.0, %v2235
        %2237 = vdwg.mxu0
        %v2240 = vunpack.c.l.b16 %v2098
        %v2241 = vunpack.c.l.b16 %v2099
        %v2242 = vpack.c.b16 %v2241, %v2240
        %v2244 = vsel %vm1440, %v2242, 0
        %v2247 = vsel %vm2120, %v2109, 0
        %2249 = vmatpush.bf16.msra.mxu0 0
        %2250 = vmatpush.bf16.msra.mxu0 0
        %2251 = vmatpush.bf16.msra.mxu0 0
        %2252 = vmatpush.bf16.msra.mxu0 0
        %2253 = vmatpush.bf16.msra.mxu0 0
        %2254 = vmatpush.bf16.msra.mxu0 0
        %2255 = vmatpush.bf16.msra.mxu0 0
        %2256 = vmatpush.bf16.msra.mxu0 %v2247
        %2257 = vmatmul.bf16.gmra.mxu0 %v2244
        %v2258 = vpop.f32.mrf.mxu0
        %v2259 = vadd.f32 0.0, %v2258
        %v2260 = vpop.f32.mrf.mxu0
        %v2261 = vadd.f32 0.0, %v2260
        %2262 = vdwg.mxu0
        %v2265 = vunpack.c.l.b16 %v2100
        %v2266 = vunpack.c.l.b16 %v2101
        %v2267 = vpack.c.b16 %v2266, %v2265
        %v2269 = vsel %vm1440, %v2267, 0
        %v2272 = vsel %vm2120, %v2110, 0
        %2274 = vmatpush.bf16.msra.mxu0 0
        %2275 = vmatpush.bf16.msra.mxu0 0
        %2276 = vmatpush.bf16.msra.mxu0 0
        %2277 = vmatpush.bf16.msra.mxu0 0
        %2278 = vmatpush.bf16.msra.mxu0 0
        %2279 = vmatpush.bf16.msra.mxu0 0
        %2280 = vmatpush.bf16.msra.mxu0 0
        %2281 = vmatpush.bf16.msra.mxu0 %v2272
        %2282 = vmatmul.bf16.gmra.mxu0 %v2269
        %v2283 = vpop.f32.mrf.mxu0
        %v2284 = vadd.f32 0.0, %v2283
        %v2285 = vpop.f32.mrf.mxu0
        %v2286 = vadd.f32 0.0, %v2285
        %2287 = vdwg.mxu0
        %v2290 = vunpack.c.l.b16 %v2102
        %v2291 = vunpack.c.l.b16 %v2103
        %v2292 = vpack.c.b16 %v2291, %v2290
        %v2294 = vsel %vm1440, %v2292, 0
        %v2297 = vsel %vm2120, %v2111, 0
        %2299 = vmatpush.bf16.msra.mxu0 0
        %2300 = vmatpush.bf16.msra.mxu0 0
        %2301 = vmatpush.bf16.msra.mxu0 0
        %2302 = vmatpush.bf16.msra.mxu0 0
        %2303 = vmatpush.bf16.msra.mxu0 0
        %2304 = vmatpush.bf16.msra.mxu0 0
        %2305 = vmatpush.bf16.msra.mxu0 0
        %2306 = vmatpush.bf16.msra.mxu0 %v2297
        %2307 = vmatmul.bf16.gmra.mxu0 %v2294
        %v2308 = vpop.f32.mrf.mxu0
        %v2309 = vadd.f32 0.0, %v2308
        %v2310 = vpop.f32.mrf.mxu0
        %v2311 = vadd.f32 0.0, %v2310
        %2312 = vdwg.mxu0
        %v2313 = vsel %vm346, %v2134, 0.0
        %v2314 = vsel %vm346, %v2159, 0.0
        %v2315 = vadd.f32 %v2313, %v2314
        %v2316 = vsel %vm346, %v2184, 0.0
        %v2317 = vadd.f32 %v2315, %v2316
        %v2318 = vsel %vm346, %v2209, 0.0
        %v2319 = vadd.f32 %v2317, %v2318
        %v2320 = vsel %vm346, %v2234, 0.0
        %v2321 = vadd.f32 %v2319, %v2320
        %v2322 = vsel %vm346, %v2259, 0.0
        %v2323 = vadd.f32 %v2321, %v2322
        %v2324 = vsel %vm346, %v2284, 0.0
        %v2325 = vadd.f32 %v2323, %v2324
        %v2326 = vsel %vm346, %v2309, 0.0
        %v2327 = vadd.f32 %v2325, %v2326
        %v2328 = vsel %vm346, %v2136, 0.0
        %v2329 = vsel %vm346, %v2161, 0.0
        %v2330 = vadd.f32 %v2328, %v2329
        %v2331 = vsel %vm346, %v2186, 0.0
        %v2332 = vadd.f32 %v2330, %v2331
        %v2333 = vsel %vm346, %v2211, 0.0
        %v2334 = vadd.f32 %v2332, %v2333
        %v2335 = vsel %vm346, %v2236, 0.0
        %v2336 = vadd.f32 %v2334, %v2335
        %v2337 = vsel %vm346, %v2261, 0.0
        %v2338 = vadd.f32 %v2336, %v2337
        %v2339 = vsel %vm346, %v2286, 0.0
        %v2340 = vadd.f32 %v2338, %v2339
        %v2341 = vsel %vm346, %v2311, 0.0
        %v2342 = vadd.f32 %v2340, %v2341
        %v2343 = vld [vmem:[%s5] sm:$0x1]
        %v2345 = vperm.slane %v2343, 0
        %v2347 = vadd.f32 %v2327, %v2345
        %v2348 = vadd.f32 %v2342, %v2345
        %2349 = vst.msk [vmem:[%s244] sm:$0xff] %vm346, %v2347
        %2350 = vst.msk [vmem:[%s244 + $0x8] sm:$0xff] %vm346, %v2348
        %s2351 = sand.u32 %s159, 1
        %s2352 = scalar_lea.sflag [#allocation3], %s2351
        %s2353 = sand.u32 %s159, 1
        %s2354 = smul.addr %s2353, 16
        %s2355 = scalar_lea.vmem [#allocation2], %s2354
        // Predicated region
        $region45: #{tpu_custom_call.1} parent=43 // pred_check
          %p2356 = pneg %p169
        $region46: #{tpu_custom_call.1} parent=43 // pred_check_branch
          %2358 = sbr.rel (%p2356) target = $region48
        $region47: #{tpu_custom_call.1} parent=43 // pred_region
          %2360 = vsyncadd %s2352, 0
          %s2361 = smul.addr %s20, 2
          %s2362 = smul.addr %s2361, 8
          %s2363 = scalar_lea.hbm %s6, %s2362
          %s2364 = sshll.u32 %s2355, 4
          %s2365 = int_to_ptr.vmem [resolvable:$true] %s2364
          %s2366 = sshll.u32 %s2363, 4
          %s2367 = int_to_ptr.hbm [resolvable:$true] %s2366
          %2372 = dma.vmem_to_hbm [thread:$0]  %s2365, 256, %s2367, %s2352, 128, 128, 8
        $region48: #{tpu_custom_call.1} parent=43 // pred_fallthru
          _
      $region44: #{tpu_custom_call.1} parent=5 // pred_fallthru
        _
      %p2373 = scmp.le.s32.totalorder 2, %s15
      // Predicated region
      $region49: #{tpu_custom_call.1} parent=5 // pred_check
        %p2374 = pneg %p2373
      $region50: #{tpu_custom_call.1} parent=5 // pred_check_branch
        %2376 = sbr.rel (%p2374) target = $region52
      $region51: #{tpu_custom_call.1} parent=5 // pred_region
        %s2377 = ssub.s32 %s15, 2
        // Predicated region
        $region53: #{tpu_custom_call.1} parent=51 // pred_check
          %p2378 = pneg %p175
        $region54: #{tpu_custom_call.1} parent=51 // pred_check_branch
          %2380 = sbr.rel (%p2378) target = $region56
        $region55: #{tpu_custom_call.1} parent=51 // pred_region
          %s2381 = sand.u32 %s160, 1
          %s2382 = scalar_lea.sflag [#allocation3], %s2381
          %s2383 = sand.u32 %s160, 1
          %s2384 = smul.addr %s2383, 16
          %s2385 = scalar_lea.vmem [#allocation2], %s2384
          %2387 = dma.done %s2382, 256
        $region56: #{tpu_custom_call.1} parent=51 // pred_fallthru
          _
      $region52: #{tpu_custom_call.1} parent=5 // pred_fallthru
        _
    $region6: #{tpu_custom_call.1} parent=1 // loop_footer
      %s19 = sadd.s32 1, %s15
    $region7: #{tpu_custom_call.1} parent=1 // loop_footer_branch
      %14 = sbr.rel target = $region3
    $region8: #{tpu_custom_call.1} parent=1 // loop_exit
      _
    %2388 = vsyncpa [#allocation3], 1
    %s2389 = scalar_lea.sflag [#allocation3], 1
    %2390 = vsyncpa %s2389, 1

</llo_original>
